<compile_context>
chip_gen: v7x
topology: tpu7x:2x2x1
jax: 0.10.0
libtpu: 0.0.40
codegen_flags: <defaults>
</compile_context>

<pallas_src>
import functools

import jax
import jax.numpy as jnp
from jax import lax
from jax.experimental import pallas as pl
from jax.experimental.pallas import tpu as pltpu


# ----------------------------- sizes / padding -----------------------------

IMG_CH = 3            # RGB input
C_PAD = 4             # input channels 3 -> 4 (sublane dim of the streamed image)
STEM_CH = 32          # surrogate stem output channels
NUM_FEATS = 1000      # EfficientNet classifier width
NUM_FEATS_PAD = 1024  # 8 full 128-lane vregs
NUM_CLASSES = 2
HEAD_PAD = 128        # lane-dense head output (sliced to 2 outside)


def _round_up(x, m):
    return ((x + m - 1) // m) * m


# ----------------------------- Pallas kernel -----------------------------

def _fused_kernel(x_ref, w_ref, b_ref, cw_ref, cb_ref, fw_ref, fb_ref,
                  o_ref, acc_ref, *, H, W, Wp, tile_h, rg, inv_hw):
    """One grid step = (batch b, row-tile t).

    x_ref : (C_PAD, (tile_h+3)*Wp) bf16 -- zero-padded image rows for this tile
            (2 halo rows + 1 slack row), width padded to Wp (multiple of 128).
    w_ref : (STEM_CH, 9*C_PAD) bf16 -- 3x3 stem taps, columns ordered (dh, dw, c).
    b_ref : (STEM_CH, 1) f32         -- stem bias.
    cw_ref: (STEM_CH, NUM_FEATS_PAD) bf16, cb_ref: (1, NUM_FEATS_PAD) f32
    fw_ref: (NUM_FEATS_PAD, HEAD_PAD) bf16, fb_ref: (1, HEAD_PAD) f32
    o_ref : (1, HEAD_PAD) f32        -- sigmoid(head), written on the last tile.
    acc_ref: (STEM_CH, 1) f32        -- GAP accumulator, persists across tiles.
    """
    t = pl.program_id(1)
    nt = pl.num_programs(1)

    @pl.when(t == 0)
    def _init():
        acc_ref[...] = jnp.zeros_like(acc_ref)

    # ---- in-kernel 3x3 patch formation + stem conv + swish + masked GAP ----
    rows_valid = jnp.minimum(tile_h, H - t * tile_h)       # valid output rows here
    rg_log2 = rg.bit_length() - 1
    n_groups = (rows_valid + rg - 1) >> rg_log2            # row-groups actually needed

    w_all = w_ref[...]                                     # (32, 36) bf16, resident
    w_taps = [w_all[:, 4 * k:4 * (k + 1)] for k in range(9)]
    bias = b_ref[...]                                      # (32, 1) f32

    glen = rg * Wp                                         # lanes per row-group
    win_len = (rg + 3) * Wp                                # group window incl. halo
    lane = lax.broadcasted_iota(jnp.int32, (1, glen), 1)
    if rg == 1:
        col_ok = lane < W                                  # one image row per group
    else:
        # rg > 1 only when Wp is a power of two, so `% Wp` is a cheap bitwise AND.
        col_ok = (lane & (Wp - 1)) < W

    def group_body(g, acc_col):
        base = pl.multiple_of(g * glen, 128)
        win = x_ref[:, pl.ds(base, win_len)]               # (C_PAD, win_len) bf16
        conv = None
        for k in range(9):                                 # nine shifted views = 3x3 taps
            dh, dw = divmod(k, 3)
            off = dh * Wp + dw
            v = win[:, off:off + glen]                     # (C_PAD, glen) bf16
            part = jnp.dot(w_taps[k], v, preferred_element_type=jnp.float32)
            conv = part if conv is None else conv + part   # (32, glen) f32 on the MXU
        y = conv + bias
        y = y * jax.nn.sigmoid(y)                          # swish (VPU + EUP)
        ok = col_ok & (lane < (rows_valid - g * rg) * Wp)  # drop pad cols / pad rows
        y = jnp.where(ok, y, 0.0)
        return acc_col + jnp.sum(y, axis=1, keepdims=True)  # XLU lane reduce -> (32, 1)

    acc_col = lax.fori_loop(0, n_groups, group_body,
                            jnp.zeros((STEM_CH, 1), jnp.float32))
    acc_ref[...] += acc_col

    # ---- fused classifier + module head, once per batch row (epilogue) ----
    @pl.when(t == nt - 1)
    def _epilogue():
        pooled = jnp.transpose(acc_ref[...] * inv_hw)                  # (1, 32) f32
        logits = jnp.dot(pooled.astype(jnp.bfloat16), cw_ref[...],
                         preferred_element_type=jnp.float32) + cb_ref[...]
        h = jnp.maximum(logits, 0.0)                                   # F.relu
        out = jnp.dot(h.astype(jnp.bfloat16), fw_ref[...],
                      preferred_element_type=jnp.float32) + fb_ref[...]
        o_ref[...] = jax.nn.sigmoid(out)                               # torch.sigmoid


# ----------------------------- pallas_call wrapper -----------------------------

def efficientnet_forward(params, x_nchw, *, tile_rows=None, interpret=False):
    """Reproduces Efficientnet.forward: backbone -> relu -> fc -> sigmoid."""
    B, C, H, W = x_nchw.shape
    assert C == IMG_CH, x_nchw.shape

    Wp = max(128, _round_up(W + 2, 128))      # lane-dense padded width
    rg = max(1, 512 // Wp)                    # rows per inner group (~512 lanes)
    assert rg == 1 or (Wp & (Wp - 1)) == 0    # rg > 1 only when Wp is a power of two

    if tile_rows is None:
        # biggest row-tile whose double-buffered bf16 block stays under ~12 MiB
        budget = 6 * 1024 * 1024
        tile_rows = max(rg, budget // (C_PAD * Wp * 2))
    tile_h = _round_up(min(max(int(tile_rows), rg), max(H, rg)), rg)
    nt = pl.cdiv(H, tile_h)
    lt = (tile_h + 3) * Wp

    # Lay the image out for the kernel exactly once:
    #   NCHW f32 -> (B, NT, C_PAD, (tile_h+3)*Wp) bf16, zero 'same'-conv border,
    #   lane alignment, and per-tile halo rows materialized (2 duplicated rows/tile).
    rows_total = nt * tile_h + 3
    xp = jnp.pad(x_nchw.astype(jnp.bfloat16),
                 ((0, 0), (0, C_PAD - C), (1, rows_total - H - 1), (1, Wp - W - 1)))
    xt = jnp.stack(
        [xp[:, :, t * tile_h: t * tile_h + tile_h + 3, :] for t in range(nt)],
        axis=1).reshape(B, nt, C_PAD, lt)

    kern = functools.partial(
        _fused_kernel, H=H, W=W, Wp=Wp, tile_h=tile_h, rg=rg,
        inv_hw=1.0 / float(H * W))

    # VMEM footprint: double-buffered image tile + resident (cls/fc) weights.
    tile_bytes = C_PAD * lt * 2
    weight_bytes = ((STEM_CH * 9 * C_PAD + STEM_CH * NUM_FEATS_PAD
                     + NUM_FEATS_PAD * HEAD_PAD) * 2
                    + (STEM_CH + NUM_FEATS_PAD + 2 * HEAD_PAD) * 4)
    est = 2 * tile_bytes + 2 * weight_bytes + (1 << 20)
    vmem_limit = int(min(48 * 1024 * 1024,
                         max(est + 8 * 1024 * 1024, 20 * 1024 * 1024)))

    out = pl.pallas_call(
        kern,
        out_shape=jax.ShapeDtypeStruct((B, 1, HEAD_PAD), jnp.float32),
        grid=(B, nt),
        in_specs=[
            # image tiles stream / double-buffer over the row-tile (reduction) axis
            pl.BlockSpec((None, None, C_PAD, lt), lambda b, t: (b, t, 0, 0)),
            # stem / classifier / head params: constant index_map -> VMEM-resident
            pl.BlockSpec((STEM_CH, 9 * C_PAD), lambda b, t: (0, 0)),
            pl.BlockSpec((STEM_CH, 1), lambda b, t: (0, 0)),
            pl.BlockSpec((STEM_CH, NUM_FEATS_PAD), lambda b, t: (0, 0)),
            pl.BlockSpec((1, NUM_FEATS_PAD), lambda b, t: (0, 0)),
            pl.BlockSpec((NUM_FEATS_PAD, HEAD_PAD), lambda b, t: (0, 0)),
            pl.BlockSpec((1, HEAD_PAD), lambda b, t: (0, 0)),
        ],
        # output block constant across the reduction axis -> written in the epilogue
        out_specs=pl.BlockSpec((None, 1, HEAD_PAD), lambda b, t: (b, 0, 0)),
        scratch_shapes=[pltpu.VMEM((STEM_CH, 1), jnp.float32)],
        compiler_params=pltpu.CompilerParams(
            dimension_semantics=("parallel", "arbitrary"),
            vmem_limit_bytes=vmem_limit),
        interpret=interpret,
    )(xt, params["stem_w"], params["stem_b"], params["cls_w"], params["cls_b"],
      params["fc_w"], params["fc_b"])

    return out.reshape(B, HEAD_PAD)[:, :NUM_CLASSES]


# ----------------------------- params / reference -----------------------------

def init_params(key):
    ks = jax.random.split(key, 6)
    w3 = 0.05 * jax.random.normal(ks[0], (3, 3, IMG_CH, STEM_CH), jnp.float32)
    b = 0.01 * jax.random.normal(ks[1], (STEM_CH,), jnp.float32)
    cls_w = 0.05 * jax.random.normal(ks[2], (STEM_CH, NUM_FEATS), jnp.float32)
    cls_b = 0.01 * jax.random.normal(ks[3], (NUM_FEATS,), jnp.float32)
    fc_w = 0.05 * jax.random.normal(ks[4], (NUM_FEATS, NUM_CLASSES), jnp.float32)
    fc_b = 0.01 * jax.random.normal(ks[5], (NUM_CLASSES,), jnp.float32)

    # Kernel layouts.  All padding is zeros, so padded rows/cols never leak.
    w_taps = jnp.pad(w3, ((0, 0), (0, 0), (0, C_PAD - IMG_CH), (0, 0)))   # (3,3,4,32)
    w_taps = jnp.transpose(w_taps, (3, 0, 1, 2)).reshape(STEM_CH, 9 * C_PAD)
    return {
        "stem_w3": w3,                                    # f32, reference layout
        "stem_w": w_taps.astype(jnp.bfloat16),            # (32, 36) bf16
        "stem_b": b.reshape(STEM_CH, 1),                  # (32, 1) f32
        "cls_w": jnp.pad(cls_w, ((0, 0), (0, NUM_FEATS_PAD - NUM_FEATS))
                         ).astype(jnp.bfloat16),
        "cls_b": jnp.pad(cls_b, (0, NUM_FEATS_PAD - NUM_FEATS)).reshape(1, NUM_FEATS_PAD),
        "fc_w": jnp.pad(fc_w, ((0, NUM_FEATS_PAD - NUM_FEATS),
                               (0, HEAD_PAD - NUM_CLASSES))).astype(jnp.bfloat16),
        "fc_b": jnp.pad(fc_b, (0, HEAD_PAD - NUM_CLASSES)).reshape(1, HEAD_PAD),
    }


def reference_forward(params, x_nchw):
    """Pure-JAX reference of the same (surrogate-backbone) math."""
    B, C, H, W = x_nchw.shape
    xp = jnp.pad(x_nchw.astype(jnp.bfloat16), ((0, 0), (0, 0), (1, 1), (1, 1)))
    w3 = params["stem_w3"].astype(jnp.bfloat16)
    conv = jnp.zeros((B, STEM_CH, H, W), jnp.float32)
    for dh in range(3):
        for dw in range(3):
            patch = xp[:, :, dh:dh + H, dw:dw + W]
            conv = conv + jnp.einsum("bchw,co->bohw", patch, w3[dh, dw],
                                     preferred_element_type=jnp.float32)
    feat = conv + params["stem_b"].reshape(1, STEM_CH, 1, 1)
    feat = feat * jax.nn.sigmoid(feat)                       # swish
    pooled = jnp.mean(feat, axis=(2, 3))                     # (B, 32) f32
    logits = jnp.dot(pooled.astype(jnp.bfloat16), params["cls_w"],
                     preferred_element_type=jnp.float32) + params["cls_b"]
    h = jnp.maximum(logits, 0.0)
    out = jnp.dot(h.astype(jnp.bfloat16), params["fc_w"],
                  preferred_element_type=jnp.float32) + params["fc_b"]
    return jax.nn.sigmoid(out)[:, :NUM_CLASSES]


# ----------------------------- main -----------------------------

if __name__ == "__main__":
    key = jax.random.PRNGKey(0)
    k_param, k_x = jax.random.split(key)

    params = init_params(k_param)
    x = jax.random.normal(k_x, (2, 3, 32, 32), jnp.float32)   # small NCHW input

    y_ref = reference_forward(params, x)

    # tile_rows=12 forces a multi-tile reduction (with a partial last tile) so the
    # accumulator, masking and fused epilogue paths are all exercised at this size.
    fwd = jax.jit(functools.partial(efficientnet_forward, tile_rows=12))
    y = jax.block_until_ready(fwd(params, x))

    assert y.shape == (2, NUM_CLASSES), y.shape
    assert bool(jnp.all((y >= 0.0) & (y <= 1.0))), "sigmoid range violated"
    assert bool(jnp.allclose(y, y_ref, atol=2e-2, rtol=2e-2)), (
        "mismatch vs reference (tiled), max abs err = "
        + str(float(jnp.max(jnp.abs(y - y_ref)))))

    # Also exercise the default single-tile (auto VMEM-budget) path.
    y2 = jax.block_until_ready(jax.jit(efficientnet_forward)(params, x))
    assert bool(jnp.allclose(y2, y_ref, atol=2e-2, rtol=2e-2)), (
        "mismatch vs reference (single tile), max abs err = "
        + str(float(jnp.max(jnp.abs(y2 - y_ref)))))

    print("KERNEL_OK")
</pallas_src>

<mosaic_0001>
module attributes {stable_mosaic.version = 11 : i64} {
  func.func @_fused_kernel(%arg0: i32, %arg1: i32, %arg2: memref<1x1x4x1920xbf16, #tpu.memory_space<vmem>>, %arg3: memref<32x36xbf16, #tpu.memory_space<vmem>>, %arg4: memref<32x1xf32, #tpu.memory_space<vmem>>, %arg5: memref<32x1024xbf16, #tpu.memory_space<vmem>>, %arg6: memref<1x1024xf32, #tpu.memory_space<vmem>>, %arg7: memref<1024x128xbf16, #tpu.memory_space<vmem>>, %arg8: memref<1x128xf32, #tpu.memory_space<vmem>>, %arg9: memref<1x1x128xf32, #tpu.memory_space<vmem>>, %arg10: memref<32x1xf32, #tpu.memory_space<vmem>>) attributes {dimension_semantics = [#tpu.dimension_semantics<parallel>, #tpu.dimension_semantics<arbitrary>], iteration_bounds = array<i64: 2, 3>, scalar_prefetch = 0 : i64, scratch_operands = 1 : i64, tpu.core_type = #tpu.core_type<tc>, window_params = [{transform_indices = @transform_0, window_bounds = array<i64: 1, 1, 4, 1920>}, {pipeline_mode = #tpu.pipeline_mode<synchronous>, transform_indices = @transform_1, window_bounds = array<i64: 32, 36>}, {pipeline_mode = #tpu.pipeline_mode<synchronous>, transform_indices = @transform_2, window_bounds = array<i64: 32, 1>}, {pipeline_mode = #tpu.pipeline_mode<synchronous>, transform_indices = @transform_3, window_bounds = array<i64: 32, 1024>}, {pipeline_mode = #tpu.pipeline_mode<synchronous>, transform_indices = @transform_4, window_bounds = array<i64: 1, 1024>}, {pipeline_mode = #tpu.pipeline_mode<synchronous>, transform_indices = @transform_5, window_bounds = array<i64: 1024, 128>}, {pipeline_mode = #tpu.pipeline_mode<synchronous>, transform_indices = @transform_6, window_bounds = array<i64: 1, 128>}, {transform_indices = @transform_7, window_bounds = array<i64: 1, 1, 128>}]} {
    %c0_i32 = arith.constant 0 : i32
    %0 = arith.cmpi eq, %arg1, %c0_i32 : i32
    %1 = arith.extui %0 : i1 to i32
    %c0_i32_0 = arith.constant 0 : i32
    %2 = arith.cmpi ne, %1, %c0_i32_0 : i32
    scf.if %2 {
      %cst_14 = arith.constant 0.000000e+00 : f32
      %35 = vector.broadcast %cst_14 : f32 to vector<32x1xf32>
      %c0_15 = arith.constant 0 : index
      %c0_16 = arith.constant 0 : index
      %36 = vector.load %arg10[%c0_15, %c0_16] : memref<32x1xf32, #tpu.memory_space<vmem>>, vector<32x1xf32>
      tpu.vector_store %arg10[%c0_15, %c0_16], %35 {strides = array<i32>} : memref<32x1xf32, #tpu.memory_space<vmem>>, vector<32x1xf32>,
    } else {
    }
    %c12_i32 = arith.constant 12 : i32
    %3 = arith.muli %arg1, %c12_i32 : i32
    %c32_i32 = arith.constant 32 : i32
    %4 = arith.subi %c32_i32, %3 : i32
    %c12_i32_1 = arith.constant 12 : i32
    %5 = arith.minsi %c12_i32_1, %4 : i32
    %c4_i32 = arith.constant 4 : i32
    %6 = arith.addi %5, %c4_i32 : i32
    %c1_i32 = arith.constant 1 : i32
    %7 = arith.subi %6, %c1_i32 : i32
    %c2_i32 = arith.constant 2 : i32
    %8 = arith.shrsi %7, %c2_i32 : i32
    %c0 = arith.constant 0 : index
    %c0_2 = arith.constant 0 : index
    %9 = vector.load %arg3[%c0, %c0_2] : memref<32x36xbf16, #tpu.memory_space<vmem>>, vector<32x36xbf16>
    %10 = vector.extract_strided_slice %9 {offsets = [0, 0], sizes = [32, 4], strides = [1, 1]} : vector<32x36xbf16> to vector<32x4xbf16>
    %11 = vector.extract_strided_slice %9 {offsets = [0, 4], sizes = [32, 4], strides = [1, 1]} : vector<32x36xbf16> to vector<32x4xbf16>
    %12 = vector.extract_strided_slice %9 {offsets = [0, 8], sizes = [32, 4], strides = [1, 1]} : vector<32x36xbf16> to vector<32x4xbf16>
    %13 = vector.extract_strided_slice %9 {offsets = [0, 12], sizes = [32, 4], strides = [1, 1]} : vector<32x36xbf16> to vector<32x4xbf16>
    %14 = vector.extract_strided_slice %9 {offsets = [0, 16], sizes = [32, 4], strides = [1, 1]} : vector<32x36xbf16> to vector<32x4xbf16>
    %15 = vector.extract_strided_slice %9 {offsets = [0, 20], sizes = [32, 4], strides = [1, 1]} : vector<32x36xbf16> to vector<32x4xbf16>
    %16 = vector.extract_strided_slice %9 {offsets = [0, 24], sizes = [32, 4], strides = [1, 1]} : vector<32x36xbf16> to vector<32x4xbf16>
    %17 = vector.extract_strided_slice %9 {offsets = [0, 28], sizes = [32, 4], strides = [1, 1]} : vector<32x36xbf16> to vector<32x4xbf16>
    %18 = vector.extract_strided_slice %9 {offsets = [0, 32], sizes = [32, 4], strides = [1, 1]} : vector<32x36xbf16> to vector<32x4xbf16>
    %c0_3 = arith.constant 0 : index
    %c0_4 = arith.constant 0 : index
    %19 = vector.load %arg4[%c0_3, %c0_4] : memref<32x1xf32, #tpu.memory_space<vmem>>, vector<32x1xf32>
    %20 = tpu.iota {dimensions = array<i32: 1>} : vector<1x512xi32>
    %c127_i32 = arith.constant 127 : i32
    %21 = vector.broadcast %c127_i32 : i32 to vector<1x512xi32>
    %22 = arith.andi %20, %21 : vector<1x512xi32>
    %c32_i32_5 = arith.constant 32 : i32
    %23 = vector.broadcast %c32_i32_5 : i32 to vector<1x512xi32>
    %24 = arith.cmpi slt, %22, %23 : vector<1x512xi32>
    %cst = arith.constant 0.000000e+00 : f32
    %25 = vector.broadcast %cst : f32 to vector<32x1xf32>
    %c0_i32_6 = arith.constant 0 : i32
    %26 = arith.subi %8, %c0_i32_6 : i32
    %27 = arith.addi %c0_i32_6, %26 : i32
    %c1_i32_7 = arith.constant 1 : i32
    %28 = scf.for %arg11 = %c0_i32_6 to %27 step %c1_i32_7 iter_args(%arg12 = %25) -> (vector<32x1xf32>)  : i32 {
      %c512_i32 = arith.constant 512 : i32
      %35 = arith.muli %arg11, %c512_i32 : i32
      %36 = tpu.assume_multiple %35, 128 : i32
      %c0_14 = arith.constant 0 : index
      %c0_15 = arith.constant 0 : index
      %c0_16 = arith.constant 0 : index
      %37 = arith.index_cast %36 : i32 to index
      %38 = vector.load %arg2[%c0_14, %c0_15, %c0_16, %37] : memref<1x1x4x1920xbf16, #tpu.memory_space<vmem>>, vector<1x1x4x896xbf16>
      %39 = vector.shape_cast %38 : vector<1x1x4x896xbf16> to vector<4x896xbf16>
      %40 = vector.extract_strided_slice %39 {offsets = [0, 0], sizes = [4, 512], strides = [1, 1]} : vector<4x896xbf16> to vector<4x512xbf16>
      %cst_17 = arith.constant dense<0.000000e+00> : vector<32x512xf32>
      %41 = tpu.matmul %10, %40, %cst_17 {dimension_numbers = #tpu.dot_dimension_numbers<[1], [0], [0], [1], [0, 0, 1, 1], [], []>} : vector<32x4xbf16>, vector<4x512xbf16>, vector<32x512xf32> -> vector<32x512xf32>
      %42 = vector.extract_strided_slice %39 {offsets = [0, 1], sizes = [4, 512], strides = [1, 1]} : vector<4x896xbf16> to vector<4x512xbf16>
      %cst_18 = arith.constant dense<0.000000e+00> : vector<32x512xf32>
      %43 = tpu.matmul %11, %42, %cst_18 {dimension_numbers = #tpu.dot_dimension_numbers<[1], [0], [0], [1], [0, 0, 1, 1], [], []>} : vector<32x4xbf16>, vector<4x512xbf16>, vector<32x512xf32> -> vector<32x512xf32>
      %44 = arith.addf %41, %43 : vector<32x512xf32>
      %45 = vector.extract_strided_slice %39 {offsets = [0, 2], sizes = [4, 512], strides = [1, 1]} : vector<4x896xbf16> to vector<4x512xbf16>
      %cst_19 = arith.constant dense<0.000000e+00> : vector<32x512xf32>
      %46 = tpu.matmul %12, %45, %cst_19 {dimension_numbers = #tpu.dot_dimension_numbers<[1], [0], [0], [1], [0, 0, 1, 1], [], []>} : vector<32x4xbf16>, vector<4x512xbf16>, vector<32x512xf32> -> vector<32x512xf32>
      %47 = arith.addf %44, %46 : vector<32x512xf32>
      %48 = vector.extract_strided_slice %39 {offsets = [0, 128], sizes = [4, 512], strides = [1, 1]} : vector<4x896xbf16> to vector<4x512xbf16>
      %cst_20 = arith.constant dense<0.000000e+00> : vector<32x512xf32>
      %49 = tpu.matmul %13, %48, %cst_20 {dimension_numbers = #tpu.dot_dimension_numbers<[1], [0], [0], [1], [0, 0, 1, 1], [], []>} : vector<32x4xbf16>, vector<4x512xbf16>, vector<32x512xf32> -> vector<32x512xf32>
      %50 = arith.addf %47, %49 : vector<32x512xf32>
      %51 = vector.extract_strided_slice %39 {offsets = [0, 129], sizes = [4, 512], strides = [1, 1]} : vector<4x896xbf16> to vector<4x512xbf16>
      %cst_21 = arith.constant dense<0.000000e+00> : vector<32x512xf32>
      %52 = tpu.matmul %14, %51, %cst_21 {dimension_numbers = #tpu.dot_dimension_numbers<[1], [0], [0], [1], [0, 0, 1, 1], [], []>} : vector<32x4xbf16>, vector<4x512xbf16>, vector<32x512xf32> -> vector<32x512xf32>
      %53 = arith.addf %50, %52 : vector<32x512xf32>
      %54 = vector.extract_strided_slice %39 {offsets = [0, 130], sizes = [4, 512], strides = [1, 1]} : vector<4x896xbf16> to vector<4x512xbf16>
      %cst_22 = arith.constant dense<0.000000e+00> : vector<32x512xf32>
      %55 = tpu.matmul %15, %54, %cst_22 {dimension_numbers = #tpu.dot_dimension_numbers<[1], [0], [0], [1], [0, 0, 1, 1], [], []>} : vector<32x4xbf16>, vector<4x512xbf16>, vector<32x512xf32> -> vector<32x512xf32>
      %56 = arith.addf %53, %55 : vector<32x512xf32>
      %57 = vector.extract_strided_slice %39 {offsets = [0, 256], sizes = [4, 512], strides = [1, 1]} : vector<4x896xbf16> to vector<4x512xbf16>
      %cst_23 = arith.constant dense<0.000000e+00> : vector<32x512xf32>
      %58 = tpu.matmul %16, %57, %cst_23 {dimension_numbers = #tpu.dot_dimension_numbers<[1], [0], [0], [1], [0, 0, 1, 1], [], []>} : vector<32x4xbf16>, vector<4x512xbf16>, vector<32x512xf32> -> vector<32x512xf32>
      %59 = arith.addf %56, %58 : vector<32x512xf32>
      %60 = vector.extract_strided_slice %39 {offsets = [0, 257], sizes = [4, 512], strides = [1, 1]} : vector<4x896xbf16> to vector<4x512xbf16>
      %cst_24 = arith.constant dense<0.000000e+00> : vector<32x512xf32>
      %61 = tpu.matmul %17, %60, %cst_24 {dimension_numbers = #tpu.dot_dimension_numbers<[1], [0], [0], [1], [0, 0, 1, 1], [], []>} : vector<32x4xbf16>, vector<4x512xbf16>, vector<32x512xf32> -> vector<32x512xf32>
      %62 = arith.addf %59, %61 : vector<32x512xf32>
      %63 = vector.extract_strided_slice %39 {offsets = [0, 258], sizes = [4, 512], strides = [1, 1]} : vector<4x896xbf16> to vector<4x512xbf16>
      %cst_25 = arith.constant dense<0.000000e+00> : vector<32x512xf32>
      %64 = tpu.matmul %18, %63, %cst_25 {dimension_numbers = #tpu.dot_dimension_numbers<[1], [0], [0], [1], [0, 0, 1, 1], [], []>} : vector<32x4xbf16>, vector<4x512xbf16>, vector<32x512xf32> -> vector<32x512xf32>
      %65 = arith.addf %62, %64 : vector<32x512xf32>
      %66 = vector.broadcast %19 : vector<32x1xf32> to vector<32x512xf32>
      %67 = arith.addf %65, %66 : vector<32x512xf32>
      %68 = arith.negf %67 : vector<32x512xf32>
      %69 = math.exp %68 : vector<32x512xf32>
      %cst_26 = arith.constant 1.000000e+00 : f32
      %70 = vector.broadcast %cst_26 : f32 to vector<32x512xf32>
      %71 = arith.addf %70, %69 : vector<32x512xf32>
      %72 = arith.divf %70, %71 : vector<32x512xf32>
      %73 = arith.mulf %67, %72 : vector<32x512xf32>
      %c4_i32_27 = arith.constant 4 : i32
      %74 = arith.muli %arg11, %c4_i32_27 : i32
      %75 = arith.subi %5, %74 : i32
      %c128_i32 = arith.constant 128 : i32
      %76 = arith.muli %75, %c128_i32 : i32
      %77 = vector.broadcast %76 : i32 to vector<1x512xi32>
      %78 = arith.cmpi slt, %20, %77 : vector<1x512xi32>
      %79 = arith.andi %24, %78 : vector<1x512xi1>
      %cst_28 = arith.constant 0.000000e+00 : f32
      %80 = vector.shape_cast %79 : vector<1x512xi1> to vector<1x512xi1>
      %81 = vector.broadcast %80 : vector<1x512xi1> to vector<32x512xi1>
      %82 = vector.broadcast %cst_28 : f32 to vector<32x512xf32>
      %83 = arith.select %81, %73, %82 : vector<32x512xi1>, vector<32x512xf32>
      %cst_29 = arith.constant dense<0.000000e+00> : vector<32xf32>
      %84 = vector.multi_reduction <add>, %83, %cst_29 [1] : vector<32x512xf32> to vector<32xf32>
      %85 = vector.shape_cast %84 : vector<32xf32> to vector<32x1xf32>
      %86 = arith.addf %arg12, %85 : vector<32x1xf32>
      scf.yield %86 : vector<32x1xf32>
    }
    %c0_8 = arith.constant 0 : index
    %c0_9 = arith.constant 0 : index
    %29 = vector.load %arg10[%c0_8, %c0_9] : memref<32x1xf32, #tpu.memory_space<vmem>>, vector<32x1xf32>
    %30 = arith.addf %29, %28 : vector<32x1xf32>
    %c0_10 = arith.constant 0 : index
    %c0_11 = arith.constant 0 : index
    %31 = vector.load %arg10[%c0_10, %c0_11] : memref<32x1xf32, #tpu.memory_space<vmem>>, vector<32x1xf32>
    tpu.vector_store %arg10[%c0_10, %c0_11], %30 {strides = array<i32>} : memref<32x1xf32, #tpu.memory_space<vmem>>, vector<32x1xf32>,
    %c2_i32_12 = arith.constant 2 : i32
    %32 = arith.cmpi eq, %arg1, %c2_i32_12 : i32
    %33 = arith.extui %32 : i1 to i32
    %c0_i32_13 = arith.constant 0 : i32
    %34 = arith.cmpi ne, %33, %c0_i32_13 : i32
    scf.if %34 {
      %c0_14 = arith.constant 0 : index
      %c0_15 = arith.constant 0 : index
      %35 = vector.load %arg10[%c0_14, %c0_15] : memref<32x1xf32, #tpu.memory_space<vmem>>, vector<32x1xf32>
      %cst_16 = arith.constant 9.765625E-4 : f32
      %36 = vector.broadcast %cst_16 : f32 to vector<32x1xf32>
      %37 = arith.mulf %35, %36 : vector<32x1xf32>
      %38 = tpu.transpose %37, [1, 0] : vector<32x1xf32> -> vector<1x32xf32>
      %39 = arith.truncf %38 : vector<1x32xf32> to vector<1x32xbf16>
      %c0_17 = arith.constant 0 : index
      %c0_18 = arith.constant 0 : index
      %40 = vector.load %arg5[%c0_17, %c0_18] : memref<32x1024xbf16, #tpu.memory_space<vmem>>, vector<32x1024xbf16>
      %cst_19 = arith.constant dense<0.000000e+00> : vector<1x1024xf32>
      %41 = tpu.matmul %39, %40, %cst_19 {dimension_numbers = #tpu.dot_dimension_numbers<[1], [0], [0], [1], [0, 0, 1, 1], [], []>} : vector<1x32xbf16>, vector<32x1024xbf16>, vector<1x1024xf32> -> vector<1x1024xf32>
      %c0_20 = arith.constant 0 : index
      %c0_21 = arith.constant 0 : index
      %42 = vector.load %arg6[%c0_20, %c0_21] : memref<1x1024xf32, #tpu.memory_space<vmem>>, vector<1x1024xf32>
      %43 = arith.addf %41, %42 : vector<1x1024xf32>
      %cst_22 = arith.constant 0.000000e+00 : f32
      %44 = vector.broadcast %cst_22 : f32 to vector<1x1024xf32>
      %45 = arith.maximumf %43, %44 : vector<1x1024xf32>
      %46 = arith.truncf %45 : vector<1x1024xf32> to vector<1x1024xbf16>
      %c0_23 = arith.constant 0 : index
      %c0_24 = arith.constant 0 : index
      %47 = vector.load %arg7[%c0_23, %c0_24] : memref<1024x128xbf16, #tpu.memory_space<vmem>>, vector<1024x128xbf16>
      %cst_25 = arith.constant dense<0.000000e+00> : vector<1x128xf32>
      %48 = tpu.matmul %46, %47, %cst_25 {dimension_numbers = #tpu.dot_dimension_numbers<[1], [0], [0], [1], [0, 0, 1, 1], [], []>} : vector<1x1024xbf16>, vector<1024x128xbf16>, vector<1x128xf32> -> vector<1x128xf32>
      %c0_26 = arith.constant 0 : index
      %c0_27 = arith.constant 0 : index
      %49 = vector.load %arg8[%c0_26, %c0_27] : memref<1x128xf32, #tpu.memory_space<vmem>>, vector<1x128xf32>
      %50 = arith.addf %48, %49 : vector<1x128xf32>
      %51 = arith.negf %50 : vector<1x128xf32>
      %52 = math.exp %51 : vector<1x128xf32>
      %cst_28 = arith.constant 1.000000e+00 : f32
      %53 = vector.broadcast %cst_28 : f32 to vector<1x128xf32>
      %54 = arith.addf %53, %52 : vector<1x128xf32>
      %55 = arith.divf %53, %54 : vector<1x128xf32>
      %c0_29 = arith.constant 0 : index
      %c0_30 = arith.constant 0 : index
      %c0_31 = arith.constant 0 : index
      %56 = vector.load %arg9[%c0_29, %c0_30, %c0_31] : memref<1x1x128xf32, #tpu.memory_space<vmem>>, vector<1x1x128xf32>
      %57 = vector.shape_cast %56 : vector<1x1x128xf32> to vector<1x128xf32>
      %58 = vector.shape_cast %55 : vector<1x128xf32> to vector<1x1x128xf32>
      tpu.vector_store %arg9[%c0_29, %c0_30, %c0_31], %58 {strides = array<i32>} : memref<1x1x128xf32, #tpu.memory_space<vmem>>, vector<1x1x128xf32>,
    } else {
    }
    return
  }
  func.func @transform_0(%arg0: i32, %arg1: i32) -> (i32, i32, i32, i32) {
    %c0_i32 = arith.constant 0 : i32
    %c0_i32_0 = arith.constant 0 : i32
    %c0_i32_1 = arith.constant 0 : i32
    return %arg0, %arg1, %c0_i32, %c0_i32_0 : i32, i32, i32, i32
  }
  func.func @transform_1(%arg0: i32, %arg1: i32) -> (i32, i32) {
    %c0_i32 = arith.constant 0 : i32
    %c0_i32_0 = arith.constant 0 : i32
    %c0_i32_1 = arith.constant 0 : i32
    return %c0_i32, %c0_i32_0 : i32, i32
  }
  func.func @transform_2(%arg0: i32, %arg1: i32) -> (i32, i32) {
    %c0_i32 = arith.constant 0 : i32
    %c0_i32_0 = arith.constant 0 : i32
    %c0_i32_1 = arith.constant 0 : i32
    return %c0_i32, %c0_i32_0 : i32, i32
  }
  func.func @transform_3(%arg0: i32, %arg1: i32) -> (i32, i32) {
    %c0_i32 = arith.constant 0 : i32
    %c0_i32_0 = arith.constant 0 : i32
    %c0_i32_1 = arith.constant 0 : i32
    return %c0_i32, %c0_i32_0 : i32, i32
  }
  func.func @transform_4(%arg0: i32, %arg1: i32) -> (i32, i32) {
    %c0_i32 = arith.constant 0 : i32
    %c0_i32_0 = arith.constant 0 : i32
    %c0_i32_1 = arith.constant 0 : i32
    return %c0_i32, %c0_i32_0 : i32, i32
  }
  func.func @transform_5(%arg0: i32, %arg1: i32) -> (i32, i32) {
    %c0_i32 = arith.constant 0 : i32
    %c0_i32_0 = arith.constant 0 : i32
    %c0_i32_1 = arith.constant 0 : i32
    return %c0_i32, %c0_i32_0 : i32, i32
  }
  func.func @transform_6(%arg0: i32, %arg1: i32) -> (i32, i32) {
    %c0_i32 = arith.constant 0 : i32
    %c0_i32_0 = arith.constant 0 : i32
    %c0_i32_1 = arith.constant 0 : i32
    return %c0_i32, %c0_i32_0 : i32, i32
  }
  func.func @transform_7(%arg0: i32, %arg1: i32) -> (i32, i32, i32) {
    %c0_i32 = arith.constant 0 : i32
    %c0_i32_0 = arith.constant 0 : i32
    %c0_i32_1 = arith.constant 0 : i32
    return %arg0, %c0_i32, %c0_i32_0 : i32, i32, i32
  }
}

</mosaic_0001>

<llo_original>
// kernel: efficientnet_forward.1
$region0: #{efficientnet_forward.1}
  #allocation0 [shape = 'u32[]', space=smem, size = 0x4, offset = 0x4, fixed_abs, tag = 'smem constant byte address 0x4 - core index']
  #allocation1 [shape = 'u32[144,128]{1,0:T(1,128)}', space=vmem, size = 0x12000, scoped, tag = 'internal scratch']
  #allocation2 [shape = 'f32[32,1]{1,0:T(8,128)}', space=vmem, size = 0x4000, scoped, tag = 'scratch operand']
  %s0 = inlined_call_operand.vmem [shape: bf16[2,3,4,1920], index: 0, kind: input, shape index: {}]
  %s1 = inlined_call_operand.vmem [shape: bf16[32,36], index: 1, kind: input, shape index: {}]
  %s2 = inlined_call_operand.vmem [shape: f32[32,1], index: 2, kind: input, shape index: {}]
  %s3 = inlined_call_operand.vmem [shape: bf16[32,1024], index: 3, kind: input, shape index: {}]
  %s4 = inlined_call_operand.vmem [shape: f32[1,1024], index: 4, kind: input, shape index: {}]
  %s5 = inlined_call_operand.vmem [shape: bf16[1024,128], index: 5, kind: input, shape index: {}]
  %s6 = inlined_call_operand.vmem [shape: f32[1,128], index: 6, kind: input, shape index: {}]
  %s7 = inlined_call_operand.hbm [shape: f32[2,1,128], index: 7, kind: output, shape index: {}]
  %s8 = sld [smem:[#allocation0]]
  $region76: #{efficientnet_forward.1} parent=0
    _
  %s10 = ssub.s32 1, %s8
  %s11 = scalar_select 0, %s10, %s8
  $region1: #{efficientnet_forward.1} parent=0
    #allocation3 [shape = 'u8[1024]{0}', space=vmem, size = 0x400, scoped, tag = 'output window, operand 0']
    #allocation4 [shape = 's32[2]{0}', space=sflag, size = 0x8, scoped, tag = 'scoped memory for efficientnet_forward.1']
    %12 = vsyncpa [#allocation4], 0
    %s13 = scalar_lea.sflag [#allocation4], 1
    %14 = vsyncpa %s13, 0
    loop: start=0, step=1, limit=8
    $region2: #{efficientnet_forward.1} parent=1 // loop_pre_header
      _
    $region3: #{efficientnet_forward.1} parent=1 // loop_header
      %s16 = sphi 0, %s20
      %p17 = scmp.ge.s32.totalorder %s16, 8
      %s23 = sphi 0, %s35
      %s24 = sphi 0, %s31
      %s25 = sphi 0, %s23
      %s26 = sphi 0, %s24
      %s27 = sphi 0, %s25
      %s28 = sphi 0, %s26
      %s40 = sphi 0, %s42
      %s43 = sphi 0, %s40
      %s44 = sphi 0, %s43
      %s60 = sphi 0, %s44
      %s64 = sphi 0, %s64
      %s66 = sphi 0, %s64
      %s67 = sphi 0, %s66
      %s81 = sphi 0, %s67
      %s85 = sphi 0, %s85
      %s87 = sphi 0, %s85
      %s88 = sphi 0, %s87
      %s102 = sphi 0, %s88
      %s106 = sphi 0, %s106
      %s108 = sphi 0, %s106
      %s109 = sphi 0, %s108
      %s123 = sphi 0, %s109
      %s127 = sphi 0, %s127
      %s129 = sphi 0, %s127
      %s130 = sphi 0, %s129
      %s144 = sphi 0, %s130
      %s148 = sphi 0, %s148
      %s150 = sphi 0, %s148
      %s151 = sphi 0, %s150
      %s165 = sphi 0, %s151
      %s169 = sphi 0, %s169
      %s171 = sphi 0, %s169
      %s172 = sphi 0, %s171
      %s186 = sphi 0, %s172
      %s192 = sphi 0, %s194
      %s195 = sphi 0, %s192
      %s196 = sphi 0, %s195
      %s212 = sphi 0, %s196
    $region4: #{efficientnet_forward.1} parent=1 // loop_header_branch
      %19 = sbr.rel (%p17) target = $region8
    $region5: #{efficientnet_forward.1} parent=1 // loop_body
      %s21 = ssub.s32 %s16, 1
      %s22 = ssub.s32 %s16, 2
      %s29 = sadd.s32 1, %s24
      %p30 = scmp.ge.s32.totalorder %s29, 3
      %s31 = scalar_select %p30, 0, %s29
      %s32 = sadd.s32 1, %s23
      %s33 = scalar_select %p30, %s32, %s23
      %p34 = scmp.ge.s32.totalorder %s33, 2
      %s35 = scalar_select %p34, 0, %s33
      %s36 = ssub.s32 %s23, %s35
      %s37 = ssub.s32 %s24, %s31
      %s38 = sor.u32 %s36, %s37
      %p39 = scmp.eq.s32.totalorder %s38, 0
      %s41 = sadd.s32 %s40, 1
      %s42 = scalar_select %p39, %s40, %s41
      %p45 = pneg %p39
      %p46 = scmp.eq.s32.totalorder %s16, 5
      %p47 = por %p45, %p46
      %p48 = scmp.ne.s32.totalorder %s40, %s43
      %p49 = scmp.eq.s32.totalorder %s16, 0
      %p50 = por %p48, %p49
      %p51 = scmp.ne.s32.totalorder %s40, %s43
      %p52 = scmp.eq.s32.totalorder %s21, 5
      %p53 = por %p51, %p52
      %p54 = scmp.ne.s32.totalorder %s43, %s44
      %p55 = scmp.eq.s32.totalorder %s21, 0
      %p56 = por %p54, %p55
      %p57 = scmp.ne.s32.totalorder %s43, %s44
      %p58 = scmp.eq.s32.totalorder %s22, 5
      %p59 = por %p57, %p58
      %p61 = scmp.ne.s32.totalorder %s44, %s60
      %p62 = scmp.eq.s32.totalorder %s22, 0
      %p63 = por %p61, %p62
      %s65 = sadd.s32 %s64, 1
      %p68 = scmp.eq.s32.totalorder %s16, 5
      %p69 = scmp.ne.s32.totalorder %s64, %s66
      %p70 = scmp.eq.s32.totalorder %s16, 0
      %p71 = por %p69, %p70
      %p72 = scmp.ne.s32.totalorder %s64, %s66
      %p73 = scmp.eq.s32.totalorder %s21, 5
      %p74 = por %p72, %p73
      %p75 = scmp.ne.s32.totalorder %s66, %s67
      %p76 = scmp.eq.s32.totalorder %s21, 0
      %p77 = por %p75, %p76
      %p78 = scmp.ne.s32.totalorder %s66, %s67
      %p79 = scmp.eq.s32.totalorder %s22, 5
      %p80 = por %p78, %p79
      %p82 = scmp.ne.s32.totalorder %s67, %s81
      %p83 = scmp.eq.s32.totalorder %s22, 0
      %p84 = por %p82, %p83
      %s86 = sadd.s32 %s85, 1
      %p89 = scmp.eq.s32.totalorder %s16, 5
      %p90 = scmp.ne.s32.totalorder %s85, %s87
      %p91 = scmp.eq.s32.totalorder %s16, 0
      %p92 = por %p90, %p91
      %p93 = scmp.ne.s32.totalorder %s85, %s87
      %p94 = scmp.eq.s32.totalorder %s21, 5
      %p95 = por %p93, %p94
      %p96 = scmp.ne.s32.totalorder %s87, %s88
      %p97 = scmp.eq.s32.totalorder %s21, 0
      %p98 = por %p96, %p97
      %p99 = scmp.ne.s32.totalorder %s87, %s88
      %p100 = scmp.eq.s32.totalorder %s22, 5
      %p101 = por %p99, %p100
      %p103 = scmp.ne.s32.totalorder %s88, %s102
      %p104 = scmp.eq.s32.totalorder %s22, 0
      %p105 = por %p103, %p104
      %s107 = sadd.s32 %s106, 1
      %p110 = scmp.eq.s32.totalorder %s16, 5
      %p111 = scmp.ne.s32.totalorder %s106, %s108
      %p112 = scmp.eq.s32.totalorder %s16, 0
      %p113 = por %p111, %p112
      %p114 = scmp.ne.s32.totalorder %s106, %s108
      %p115 = scmp.eq.s32.totalorder %s21, 5
      %p116 = por %p114, %p115
      %p117 = scmp.ne.s32.totalorder %s108, %s109
      %p118 = scmp.eq.s32.totalorder %s21, 0
      %p119 = por %p117, %p118
      %p120 = scmp.ne.s32.totalorder %s108, %s109
      %p121 = scmp.eq.s32.totalorder %s22, 5
      %p122 = por %p120, %p121
      %p124 = scmp.ne.s32.totalorder %s109, %s123
      %p125 = scmp.eq.s32.totalorder %s22, 0
      %p126 = por %p124, %p125
      %s128 = sadd.s32 %s127, 1
      %p131 = scmp.eq.s32.totalorder %s16, 5
      %p132 = scmp.ne.s32.totalorder %s127, %s129
      %p133 = scmp.eq.s32.totalorder %s16, 0
      %p134 = por %p132, %p133
      %p135 = scmp.ne.s32.totalorder %s127, %s129
      %p136 = scmp.eq.s32.totalorder %s21, 5
      %p137 = por %p135, %p136
      %p138 = scmp.ne.s32.totalorder %s129, %s130
      %p139 = scmp.eq.s32.totalorder %s21, 0
      %p140 = por %p138, %p139
      %p141 = scmp.ne.s32.totalorder %s129, %s130
      %p142 = scmp.eq.s32.totalorder %s22, 5
      %p143 = por %p141, %p142
      %p145 = scmp.ne.s32.totalorder %s130, %s144
      %p146 = scmp.eq.s32.totalorder %s22, 0
      %p147 = por %p145, %p146
      %s149 = sadd.s32 %s148, 1
      %p152 = scmp.eq.s32.totalorder %s16, 5
      %p153 = scmp.ne.s32.totalorder %s148, %s150
      %p154 = scmp.eq.s32.totalorder %s16, 0
      %p155 = por %p153, %p154
      %p156 = scmp.ne.s32.totalorder %s148, %s150
      %p157 = scmp.eq.s32.totalorder %s21, 5
      %p158 = por %p156, %p157
      %p159 = scmp.ne.s32.totalorder %s150, %s151
      %p160 = scmp.eq.s32.totalorder %s21, 0
      %p161 = por %p159, %p160
      %p162 = scmp.ne.s32.totalorder %s150, %s151
      %p163 = scmp.eq.s32.totalorder %s22, 5
      %p164 = por %p162, %p163
      %p166 = scmp.ne.s32.totalorder %s151, %s165
      %p167 = scmp.eq.s32.totalorder %s22, 0
      %p168 = por %p166, %p167
      %s170 = sadd.s32 %s169, 1
      %p173 = scmp.eq.s32.totalorder %s16, 5
      %p174 = scmp.ne.s32.totalorder %s169, %s171
      %p175 = scmp.eq.s32.totalorder %s16, 0
      %p176 = por %p174, %p175
      %p177 = scmp.ne.s32.totalorder %s169, %s171
      %p178 = scmp.eq.s32.totalorder %s21, 5
      %p179 = por %p177, %p178
      %p180 = scmp.ne.s32.totalorder %s171, %s172
      %p181 = scmp.eq.s32.totalorder %s21, 0
      %p182 = por %p180, %p181
      %p183 = scmp.ne.s32.totalorder %s171, %s172
      %p184 = scmp.eq.s32.totalorder %s22, 5
      %p185 = por %p183, %p184
      %p187 = scmp.ne.s32.totalorder %s172, %s186
      %p188 = scmp.eq.s32.totalorder %s22, 0
      %p189 = por %p187, %p188
      %s190 = ssub.s32 %s23, %s35
      %p191 = scmp.eq.s32.totalorder %s190, 0
      %s193 = sadd.s32 %s192, 1
      %s194 = scalar_select %p191, %s192, %s193
      %p197 = pneg %p191
      %p198 = scmp.eq.s32.totalorder %s16, 5
      %p199 = por %p197, %p198
      %p200 = scmp.ne.s32.totalorder %s192, %s195
      %p201 = scmp.eq.s32.totalorder %s16, 0
      %p202 = por %p200, %p201
      %p203 = scmp.ne.s32.totalorder %s192, %s195
      %p204 = scmp.eq.s32.totalorder %s21, 5
      %p205 = por %p203, %p204
      %p206 = scmp.ne.s32.totalorder %s195, %s196
      %p207 = scmp.eq.s32.totalorder %s21, 0
      %p208 = por %p206, %p207
      %p209 = scmp.ne.s32.totalorder %s195, %s196
      %p210 = scmp.eq.s32.totalorder %s22, 5
      %p211 = por %p209, %p210
      %p213 = scmp.ne.s32.totalorder %s196, %s212
      %p214 = scmp.eq.s32.totalorder %s22, 0
      %p215 = por %p213, %p214
      %p216 = scmp.le.s32.totalorder 1, %s16
      %p217 = scmp.lt.s32.totalorder %s16, 7
      %p218 = pnand %p216, %p217
      %p219 = pneg %p218
      // Predicated region
      $region9: #{efficientnet_forward.1} parent=5 // pred_check
        _
      $region10: #{efficientnet_forward.1} parent=5 // pred_check_branch
        %221 = sbr.rel (%p218) target = $region12
      $region11: #{efficientnet_forward.1} parent=5 // pred_region
        %s222 = ssub.s32 %s16, 1
        // Predicated region
        $region13: #{efficientnet_forward.1} parent=11 // pred_check
          %p223 = pneg %p77
        $region14: #{efficientnet_forward.1} parent=11 // pred_check_branch
          %225 = sbr.rel (%p223) target = $region16
        $region15: #{efficientnet_forward.1} parent=11 // pred_region
          _
        $region16: #{efficientnet_forward.1} parent=11 // pred_fallthru
          _
        // Predicated region
        $region17: #{efficientnet_forward.1} parent=11 // pred_check
          %p226 = pneg %p98
        $region18: #{efficientnet_forward.1} parent=11 // pred_check_branch
          %228 = sbr.rel (%p226) target = $region20
        $region19: #{efficientnet_forward.1} parent=11 // pred_region
          _
        $region20: #{efficientnet_forward.1} parent=11 // pred_fallthru
          _
        // Predicated region
        $region21: #{efficientnet_forward.1} parent=11 // pred_check
          %p229 = pneg %p119
        $region22: #{efficientnet_forward.1} parent=11 // pred_check_branch
          %231 = sbr.rel (%p229) target = $region24
        $region23: #{efficientnet_forward.1} parent=11 // pred_region
          _
        $region24: #{efficientnet_forward.1} parent=11 // pred_fallthru
          _
        // Predicated region
        $region25: #{efficientnet_forward.1} parent=11 // pred_check
          %p232 = pneg %p140
        $region26: #{efficientnet_forward.1} parent=11 // pred_check_branch
          %234 = sbr.rel (%p232) target = $region28
        $region27: #{efficientnet_forward.1} parent=11 // pred_region
          _
        $region28: #{efficientnet_forward.1} parent=11 // pred_fallthru
          _
        // Predicated region
        $region29: #{efficientnet_forward.1} parent=11 // pred_check
          %p235 = pneg %p161
        $region30: #{efficientnet_forward.1} parent=11 // pred_check_branch
          %237 = sbr.rel (%p235) target = $region32
        $region31: #{efficientnet_forward.1} parent=11 // pred_region
          _
        $region32: #{efficientnet_forward.1} parent=11 // pred_fallthru
          _
        // Predicated region
        $region33: #{efficientnet_forward.1} parent=11 // pred_check
          %p238 = pneg %p182
        $region34: #{efficientnet_forward.1} parent=11 // pred_check_branch
          %240 = sbr.rel (%p238) target = $region36
        $region35: #{efficientnet_forward.1} parent=11 // pred_region
          _
        $region36: #{efficientnet_forward.1} parent=11 // pred_fallthru
          _
      $region12: #{efficientnet_forward.1} parent=5 // pred_fallthru
        _
      %p241 = scmp.lt.s32.totalorder %s16, 6
      // Predicated region
      $region37: #{efficientnet_forward.1} parent=5 // pred_check
        %p242 = pneg %p241
      $region38: #{efficientnet_forward.1} parent=5 // pred_check_branch
        %244 = sbr.rel (%p242) target = $region40
      $region39: #{efficientnet_forward.1} parent=5 // pred_region
        // Predicated region
        $region41: #{efficientnet_forward.1} parent=39 // pred_check
          %p245 = pneg %p50
        $region42: #{efficientnet_forward.1} parent=39 // pred_check_branch
          %247 = sbr.rel (%p245) target = $region44
        $region43: #{efficientnet_forward.1} parent=39 // pred_region
          %p248 = scmp.lt.s32.totalorder %s23, 1
          %s249 = scalar_select %p248, %s23, 1
          %p250 = scmp.lt.s32.totalorder %s24, 2
          %s251 = scalar_select %p250, %s24, 2
          %s252 = smul.addr %s251, 15
          %s253 = smul.addr %s249, 45
          %s254 = sadd.s32 %s252, %s253
          %s255 = smul.addr %s254, 2
          %s256 = scalar_lea.vmem %s0, %s255
        $region44: #{efficientnet_forward.1} parent=39 // pred_fallthru
          _
      $region40: #{efficientnet_forward.1} parent=5 // pred_fallthru
        _
      %p257 = scmp.le.s32.totalorder 1, %s16
      %p258 = scmp.lt.s32.totalorder %s16, 7
      %p259 = pnand %p257, %p258
      %p260 = pneg %p259
      // Predicated region
      $region45: #{efficientnet_forward.1} parent=5 // pred_check
        _
      $region46: #{efficientnet_forward.1} parent=5 // pred_check_branch
        %262 = sbr.rel (%p259) target = $region48
      $region47: #{efficientnet_forward.1} parent=5 // pred_region
        %s263 = ssub.s32 %s16, 1
        %p264 = scmp.lt.s32.totalorder %s25, 1
        %s265 = scalar_select %p264, %s25, 1
        %p266 = scmp.lt.s32.totalorder %s26, 2
        %s267 = scalar_select %p266, %s26, 2
        %s268 = smul.addr %s267, 15
        %s269 = smul.addr %s265, 45
        %s270 = sadd.s32 %s268, %s269
        %s271 = smul.addr %s270, 2
        %s272 = scalar_lea.vmem %s0, %s271
        %p273 = pneg %p56
        %p274 = pneg %p53
        %p275 = pneg %p77
        %p276 = pneg %p74
        %p277 = pneg %p98
        %p278 = pneg %p95
        %p279 = pneg %p119
        %p280 = pneg %p116
        %p281 = pneg %p140
        %p282 = pneg %p137
        %p283 = pneg %p161
        %p284 = pneg %p158
        %p285 = pneg %p182
        %p286 = pneg %p179
        %p287 = pneg %p208
        %p288 = pneg %p205
        %s289 = sand.u32 %s195, 1
        %s290 = scalar_lea.sflag [#allocation4], %s289
        %s291 = sand.u32 %s195, 1
        %s292 = scalar_lea.vmem [#allocation3], %s291
        %p293 = scmp.lt.s32.totalorder %s25, 1
        %s294 = scalar_select %p293, %s25, 1
        %p295 = scmp.lt.s32.totalorder %s26, 2
        %s296 = scalar_select %p295, %s26, 2
        %s297 = smul.addr %s296, 15
        %s298 = smul.addr %s294, 45
        %s299 = sadd.s32 %s297, %s298
        %s300 = smul.addr %s299, 2
        %s301 = scalar_lea.vmem %s0, %s300
        %p303 = scmp.eq.s32.totalorder %s26, 0
        // Predicated region
        $region49: #{efficientnet_forward.1} parent=47 // pred_check
          %p304 = pneg %p303
        $region50: #{efficientnet_forward.1} parent=47 // pred_check_branch
          %306 = sbr.rel (%p304) target = $region52
        $region51: #{efficientnet_forward.1} parent=47 // pred_region
          %vm307 = vcmask 7168
          %308 = vst.msk [vmem:[#allocation2] sm:$0xff] %vm307, 0.0
          %309 = vst.msk [vmem:[#allocation2 + $0x8] sm:$0xff] %vm307, 0.0
          %310 = vst.msk [vmem:[#allocation2 + $0x10] sm:$0xff] %vm307, 0.0
          %311 = vst.msk [vmem:[#allocation2 + $0x18] sm:$0xff] %vm307, 0.0
        $region52: #{efficientnet_forward.1} parent=47 // pred_fallthru
          _
        %s312 = smul.u32 %s26, 12
        %s313 = ssub.s32 32, %s312
        %p314 = scmp.lt.s32.totalorder %s313, 12
        %s315 = scalar_select %p314, %s313, 12
        %s316 = sadd.s32 %s315, 3
        %s317 = sshra.s32 %s316, 2
        %v318 = vld [vmem:[%s1] sm:$0xf]
        %v319 = vld [vmem:[%s1 + $0x4] sm:$0xf]
        %v320 = vld [vmem:[%s1 + $0x8] sm:$0xf]
        %v321 = vld [vmem:[%s1 + $0xc] sm:$0xf]
        %v322 = vld [vmem:[%s2] sm:$0xff]
        %v323 = vld [vmem:[%s2 + $0x8] sm:$0xff]
        %v324 = vld [vmem:[%s2 + $0x10] sm:$0xff]
        %v325 = vld [vmem:[%s2 + $0x18] sm:$0xff]
        %v326 = vlaneseq
        %v327 = vand.u32 %v326, 127
        %v328 = vadd.s32 %v327, 128
        %v329 = vadd.s32 %v327, 256
        %v330 = vadd.s32 %v327, 384
        %v331 = vand.u32 %v327, 127
        %v332 = vand.u32 %v328, 127
        %v333 = vand.u32 %v329, 127
        %v334 = vand.u32 %v330, 127
        %vm335 = vcmp.lt.s32.totalorder %v331, 32
        %vm336 = vcmp.lt.s32.totalorder %v332, 32
        %vm337 = vcmp.lt.s32.totalorder %v333, 32
        %vm338 = vcmp.lt.s32.totalorder %v334, 32
        // While loop
        $region53: #{efficientnet_forward.1} parent=47 // loop_pre_header
          _
        $region54: #{efficientnet_forward.1} parent=47 // loop_header
          %s340 = sphi 0, %s342
          %p341 = scmp.ge.s32.totalorder %s340, %s317
          %v345 = vphi 0.0, %v1855
          %v346 = vphi 0.0, %v1856
          %v347 = vphi 0.0, %v1857
          %v348 = vphi 0.0, %v1858
        $region55: #{efficientnet_forward.1} parent=47 // loop_header_branch
          %344 = sbr.rel (%p341) target = $region59
        $region56: #{efficientnet_forward.1} parent=47 // loop_body
          %s349 = smul.u32 %s340, 512
          %s350 = sshra.s32 %s349, 7
          %s351 = sand.u32 %s349, 127
          %s352 = smul.addr %s350, 2
          %s353 = scalar_lea.vmem %s301, %s352
          %v354 = vld [vmem:[%s353] sm:$0xff]
          %v355 = vld [vmem:[%s353 + $0x8] sm:$0x3f]
          %v360 = vunpack.c.l.b16 %v318
          %v361 = vunpack.c.l.b16 %v319
          %v362 = vunpack.c.l.b16 %v320
          %v363 = vunpack.c.l.b16 %v321
          %v364 = vpack.c.b16 %v361, %v360
          %v365 = vpack.c.b16 %v363, %v362
          %366 = vrot.lane.b32.xlu0 %v364, 124
          %v367 = vpop.permute.xlu0 %366
          %368 = vrot.lane.b32.xlu0 %v365, 124
          %v369 = vpop.permute.xlu0 %368
          %v372 = vcombine.high %v354, %v354
          %v374 = vunpack.c.l.s4 1983009808
          %v375 = vunpack.c.0.s8 %v374
          %v376 = vlaneseq
          %v377 = vshrl.u32 %v376, 7
          %v378 = vsub.s32 %v375, %v377
          %v379 = vrot.slane %v354, %v378
          %v381 = vunpack.c.l.s4 1983009808
          %v382 = vunpack.c.0.s8 %v381
          %v383 = vlaneseq
          %v384 = vshrl.u32 %v383, 7
          %v385 = vsub.s32 %v382, %v384
          %v386 = vrot.slane %v372, %v385
          %v387 = vcombine.high %v379, %v379
          %v388 = vcombine.high %v386, %v386
          %v390 = vunpack.c.l.s4 1983009808
          %v391 = vunpack.c.0.s8 %v390
          %v392 = vlaneseq
          %v393 = vshrl.u32 %v392, 7
          %v394 = vsub.s32 %v391, %v393
          %v395 = vrot.slane %v355, %v394
          %396 = vrot.lane.b32.xlu0 %v379, 127
          %v397 = vpop.permute.xlu0 %396
          %398 = vrot.lane.b32.xlu0 %v387, 127
          %v399 = vpop.permute.xlu0 %398
          %400 = vrot.lane.b32.xlu0 %v386, 127
          %v401 = vpop.permute.xlu0 %400
          %402 = vrot.lane.b32.xlu0 %v388, 127
          %v403 = vpop.permute.xlu0 %402
          %404 = vrot.lane.b32.xlu0 %v395, 127
          %v405 = vpop.permute.xlu0 %404
          %vm406 = vcmask 1039360
          %v407 = vsel %vm406, %v397, %v399
          %v408 = vsel %vm406, %v399, %v401
          %v409 = vsel %vm406, %v401, %v403
          %v410 = vsel %vm406, %v403, %v405
          %vm411 = vcmask 31744
          %v413 = vsel %vm411, %v367, 0
          %v416 = vsel %vm411, %v369, 0
          %vm418 = vcmask 1041408
          %v420 = vsel %vm418, %v407, 0
          %v423 = vsel %vm418, %v408, 0
          %v426 = vsel %vm418, %v409, 0
          %v429 = vsel %vm418, %v410, 0
          %431 = vmatprep.subr.bf16.mxu0 %v423
          %432 = vmatpush1.bf16.msra.mxu0 %v420
          %433 = vmatprep.subr.bf16.mxu0 0
          %434 = vmatpush1.bf16.msra.mxu0 0
          %435 = vmatprep.subr.bf16.mxu0 0
          %436 = vmatpush1.bf16.msra.mxu0 0
          %437 = vmatprep.subr.bf16.mxu0 0
          %438 = vmatpush1.bf16.msra.mxu0 0
          %439 = vmatprep.subr.bf16.mxu0 0
          %440 = vmatpush1.bf16.msra.mxu0 0
          %441 = vmatprep.subr.bf16.mxu0 0
          %442 = vmatpush1.bf16.msra.mxu0 0
          %443 = vmatprep.subr.bf16.mxu0 0
          %444 = vmatpush1.bf16.msra.mxu0 0
          %445 = vmatprep.subr.bf16.mxu0 0
          %446 = vmatpush1.bf16.msra.mxu0 0
          %447 = vmatprep.subr.bf16.mxu0 0
          %448 = vmatpush1.bf16.msra.mxu0 0
          %449 = vmatprep.subr.bf16.mxu0 0
          %450 = vmatpush1.bf16.msra.mxu0 0
          %451 = vmatprep.subr.bf16.mxu0 0
          %452 = vmatpush1.bf16.msra.mxu0 0
          %453 = vmatprep.subr.bf16.mxu0 0
          %454 = vmatpush1.bf16.msra.mxu0 0
          %455 = vmatprep.subr.bf16.mxu0 0
          %456 = vmatpush1.bf16.msra.mxu0 0
          %457 = vmatprep.subr.bf16.mxu0 0
          %458 = vmatpush1.bf16.msra.mxu0 0
          %459 = vmatprep.subr.bf16.mxu0 0
          %460 = vmatpush1.bf16.msra.mxu0 0
          %461 = vmatprep.subr.bf16.mxu0 0
          %462 = vmatpush1.bf16.msra.mxu0 0
          %463 = vmatprep.mubr.bf16.mxu0 0
          %464 = vmatmul.mubr.bf16.gmra.mrb[0].mxu0 %v413
          %v465 = vpop.f32.mrb[0].mxu0
          %v466 = vadd.f32 0.0, %v465
          %v467 = vpop.f32.mrb[0].mxu0
          %v468 = vadd.f32 0.0, %v467
          %v469 = vpop.f32.mrb[0].mxu0
          %v470 = vadd.f32 0.0, %v469
          %v471 = vpop.f32.mrb[0].mxu0
          %v472 = vadd.f32 0.0, %v471
          %473 = vmatprep.mubr.bf16.mxu0 0
          %474 = vmatmul.mubr.bf16.gmra.mrb[0].mxu0 %v416
          %v475 = vpop.f32.mrb[0].mxu0
          %v476 = vadd.f32 0.0, %v475
          %v477 = vpop.f32.mrb[0].mxu0
          %v478 = vadd.f32 0.0, %v477
          %v479 = vpop.f32.mrb[0].mxu0
          %v480 = vadd.f32 0.0, %v479
          %v481 = vpop.f32.mrb[0].mxu0
          %v482 = vadd.f32 0.0, %v481
          %483 = vdwg.mxu0
          %484 = vmatprep.subr.bf16.mxu0 %v429
          %485 = vmatpush1.bf16.msra.mxu0 %v426
          %486 = vmatprep.subr.bf16.mxu0 0
          %487 = vmatpush1.bf16.msra.mxu0 0
          %488 = vmatprep.subr.bf16.mxu0 0
          %489 = vmatpush1.bf16.msra.mxu0 0
          %490 = vmatprep.subr.bf16.mxu0 0
          %491 = vmatpush1.bf16.msra.mxu0 0
          %492 = vmatprep.subr.bf16.mxu0 0
          %493 = vmatpush1.bf16.msra.mxu0 0
          %494 = vmatprep.subr.bf16.mxu0 0
          %495 = vmatpush1.bf16.msra.mxu0 0
          %496 = vmatprep.subr.bf16.mxu0 0
          %497 = vmatpush1.bf16.msra.mxu0 0
          %498 = vmatprep.subr.bf16.mxu0 0
          %499 = vmatpush1.bf16.msra.mxu0 0
          %500 = vmatprep.subr.bf16.mxu0 0
          %501 = vmatpush1.bf16.msra.mxu0 0
          %502 = vmatprep.subr.bf16.mxu0 0
          %503 = vmatpush1.bf16.msra.mxu0 0
          %504 = vmatprep.subr.bf16.mxu0 0
          %505 = vmatpush1.bf16.msra.mxu0 0
          %506 = vmatprep.subr.bf16.mxu0 0
          %507 = vmatpush1.bf16.msra.mxu0 0
          %508 = vmatprep.subr.bf16.mxu0 0
          %509 = vmatpush1.bf16.msra.mxu0 0
          %510 = vmatprep.subr.bf16.mxu0 0
          %511 = vmatpush1.bf16.msra.mxu0 0
          %512 = vmatprep.subr.bf16.mxu0 0
          %513 = vmatpush1.bf16.msra.mxu0 0
          %514 = vmatprep.subr.bf16.mxu0 0
          %515 = vmatpush1.bf16.msra.mxu0 0
          %516 = vmatprep.mubr.bf16.mxu0 0
          %517 = vmatmul.mubr.bf16.gmra.mrb[0].mxu0 %v413
          %v518 = vpop.f32.mrb[0].mxu0
          %v519 = vadd.f32 0.0, %v518
          %v520 = vpop.f32.mrb[0].mxu0
          %v521 = vadd.f32 0.0, %v520
          %v522 = vpop.f32.mrb[0].mxu0
          %v523 = vadd.f32 0.0, %v522
          %v524 = vpop.f32.mrb[0].mxu0
          %v525 = vadd.f32 0.0, %v524
          %526 = vmatprep.mubr.bf16.mxu0 0
          %527 = vmatmul.mubr.bf16.gmra.mrb[0].mxu0 %v416
          %v528 = vpop.f32.mrb[0].mxu0
          %v529 = vadd.f32 0.0, %v528
          %v530 = vpop.f32.mrb[0].mxu0
          %v531 = vadd.f32 0.0, %v530
          %v532 = vpop.f32.mrb[0].mxu0
          %v533 = vadd.f32 0.0, %v532
          %v534 = vpop.f32.mrb[0].mxu0
          %v535 = vadd.f32 0.0, %v534
          %536 = vdwg.mxu0
          %v538 = vsel %vm411, %v364, 0
          %v541 = vsel %vm411, %v365, 0
          %v544 = vsel %vm418, %v379, 0
          %v547 = vsel %vm418, %v387, 0
          %v550 = vsel %vm418, %v386, 0
          %v553 = vsel %vm418, %v388, 0
          %555 = vmatprep.subr.bf16.mxu0 %v547
          %556 = vmatpush1.bf16.msra.mxu0 %v544
          %557 = vmatprep.subr.bf16.mxu0 0
          %558 = vmatpush1.bf16.msra.mxu0 0
          %559 = vmatprep.subr.bf16.mxu0 0
          %560 = vmatpush1.bf16.msra.mxu0 0
          %561 = vmatprep.subr.bf16.mxu0 0
          %562 = vmatpush1.bf16.msra.mxu0 0
          %563 = vmatprep.subr.bf16.mxu0 0
          %564 = vmatpush1.bf16.msra.mxu0 0
          %565 = vmatprep.subr.bf16.mxu0 0
          %566 = vmatpush1.bf16.msra.mxu0 0
          %567 = vmatprep.subr.bf16.mxu0 0
          %568 = vmatpush1.bf16.msra.mxu0 0
          %569 = vmatprep.subr.bf16.mxu0 0
          %570 = vmatpush1.bf16.msra.mxu0 0
          %571 = vmatprep.subr.bf16.mxu0 0
          %572 = vmatpush1.bf16.msra.mxu0 0
          %573 = vmatprep.subr.bf16.mxu0 0
          %574 = vmatpush1.bf16.msra.mxu0 0
          %575 = vmatprep.subr.bf16.mxu0 0
          %576 = vmatpush1.bf16.msra.mxu0 0
          %577 = vmatprep.subr.bf16.mxu0 0
          %578 = vmatpush1.bf16.msra.mxu0 0
          %579 = vmatprep.subr.bf16.mxu0 0
          %580 = vmatpush1.bf16.msra.mxu0 0
          %581 = vmatprep.subr.bf16.mxu0 0
          %582 = vmatpush1.bf16.msra.mxu0 0
          %583 = vmatprep.subr.bf16.mxu0 0
          %584 = vmatpush1.bf16.msra.mxu0 0
          %585 = vmatprep.subr.bf16.mxu0 0
          %586 = vmatpush1.bf16.msra.mxu0 0
          %587 = vmatprep.mubr.bf16.mxu0 0
          %588 = vmatmul.mubr.bf16.gmra.mrb[0].mxu0 %v538
          %v589 = vpop.f32.mrb[0].mxu0
          %v590 = vadd.f32 %v466, %v589
          %v591 = vpop.f32.mrb[0].mxu0
          %v592 = vadd.f32 %v468, %v591
          %v593 = vpop.f32.mrb[0].mxu0
          %v594 = vadd.f32 %v470, %v593
          %v595 = vpop.f32.mrb[0].mxu0
          %v596 = vadd.f32 %v472, %v595
          %597 = vmatprep.mubr.bf16.mxu0 0
          %598 = vmatmul.mubr.bf16.gmra.mrb[0].mxu0 %v541
          %v599 = vpop.f32.mrb[0].mxu0
          %v600 = vadd.f32 %v476, %v599
          %v601 = vpop.f32.mrb[0].mxu0
          %v602 = vadd.f32 %v478, %v601
          %v603 = vpop.f32.mrb[0].mxu0
          %v604 = vadd.f32 %v480, %v603
          %v605 = vpop.f32.mrb[0].mxu0
          %v606 = vadd.f32 %v482, %v605
          %607 = vdwg.mxu0
          %608 = vmatprep.subr.bf16.mxu0 %v553
          %609 = vmatpush1.bf16.msra.mxu0 %v550
          %610 = vmatprep.subr.bf16.mxu0 0
          %611 = vmatpush1.bf16.msra.mxu0 0
          %612 = vmatprep.subr.bf16.mxu0 0
          %613 = vmatpush1.bf16.msra.mxu0 0
          %614 = vmatprep.subr.bf16.mxu0 0
          %615 = vmatpush1.bf16.msra.mxu0 0
          %616 = vmatprep.subr.bf16.mxu0 0
          %617 = vmatpush1.bf16.msra.mxu0 0
          %618 = vmatprep.subr.bf16.mxu0 0
          %619 = vmatpush1.bf16.msra.mxu0 0
          %620 = vmatprep.subr.bf16.mxu0 0
          %621 = vmatpush1.bf16.msra.mxu0 0
          %622 = vmatprep.subr.bf16.mxu0 0
          %623 = vmatpush1.bf16.msra.mxu0 0
          %624 = vmatprep.subr.bf16.mxu0 0
          %625 = vmatpush1.bf16.msra.mxu0 0
          %626 = vmatprep.subr.bf16.mxu0 0
          %627 = vmatpush1.bf16.msra.mxu0 0
          %628 = vmatprep.subr.bf16.mxu0 0
          %629 = vmatpush1.bf16.msra.mxu0 0
          %630 = vmatprep.subr.bf16.mxu0 0
          %631 = vmatpush1.bf16.msra.mxu0 0
          %632 = vmatprep.subr.bf16.mxu0 0
          %633 = vmatpush1.bf16.msra.mxu0 0
          %634 = vmatprep.subr.bf16.mxu0 0
          %635 = vmatpush1.bf16.msra.mxu0 0
          %636 = vmatprep.subr.bf16.mxu0 0
          %637 = vmatpush1.bf16.msra.mxu0 0
          %638 = vmatprep.subr.bf16.mxu0 0
          %639 = vmatpush1.bf16.msra.mxu0 0
          %640 = vmatprep.mubr.bf16.mxu0 0
          %641 = vmatmul.mubr.bf16.gmra.mrb[0].mxu0 %v538
          %v642 = vpop.f32.mrb[0].mxu0
          %v643 = vadd.f32 %v519, %v642
          %v644 = vpop.f32.mrb[0].mxu0
          %v645 = vadd.f32 %v521, %v644
          %v646 = vpop.f32.mrb[0].mxu0
          %v647 = vadd.f32 %v523, %v646
          %v648 = vpop.f32.mrb[0].mxu0
          %v649 = vadd.f32 %v525, %v648
          %650 = vmatprep.mubr.bf16.mxu0 0
          %651 = vmatmul.mubr.bf16.gmra.mrb[0].mxu0 %v541
          %v652 = vpop.f32.mrb[0].mxu0
          %v653 = vadd.f32 %v529, %v652
          %v654 = vpop.f32.mrb[0].mxu0
          %v655 = vadd.f32 %v531, %v654
          %v656 = vpop.f32.mrb[0].mxu0
          %v657 = vadd.f32 %v533, %v656
          %v658 = vpop.f32.mrb[0].mxu0
          %v659 = vadd.f32 %v535, %v658
          %660 = vdwg.mxu0
          %661 = vrot.lane.b32.xlu0 %v364, 120
          %v662 = vpop.permute.xlu0 %661
          %663 = vrot.lane.b32.xlu0 %v365, 120
          %v664 = vpop.permute.xlu0 %663
          %665 = vrot.lane.b32.xlu0 %v379, 126
          %v666 = vpop.permute.xlu0 %665
          %667 = vrot.lane.b32.xlu0 %v387, 126
          %v668 = vpop.permute.xlu0 %667
          %669 = vrot.lane.b32.xlu0 %v386, 126
          %v670 = vpop.permute.xlu0 %669
          %671 = vrot.lane.b32.xlu0 %v388, 126
          %v672 = vpop.permute.xlu0 %671
          %673 = vrot.lane.b32.xlu0 %v395, 126
          %v674 = vpop.permute.xlu0 %673
          %vm675 = vcmask 1031168
          %v676 = vsel %vm675, %v666, %v668
          %v677 = vsel %vm675, %v668, %v670
          %v678 = vsel %vm675, %v670, %v672
          %v679 = vsel %vm675, %v672, %v674
          %v681 = vsel %vm411, %v662, 0
          %v684 = vsel %vm411, %v664, 0
          %v687 = vsel %vm418, %v676, 0
          %v690 = vsel %vm418, %v677, 0
          %v693 = vsel %vm418, %v678, 0
          %v696 = vsel %vm418, %v679, 0
          %698 = vmatprep.subr.bf16.mxu0 %v690
          %699 = vmatpush1.bf16.msra.mxu0 %v687
          %700 = vmatprep.subr.bf16.mxu0 0
          %701 = vmatpush1.bf16.msra.mxu0 0
          %702 = vmatprep.subr.bf16.mxu0 0
          %703 = vmatpush1.bf16.msra.mxu0 0
          %704 = vmatprep.subr.bf16.mxu0 0
          %705 = vmatpush1.bf16.msra.mxu0 0
          %706 = vmatprep.subr.bf16.mxu0 0
          %707 = vmatpush1.bf16.msra.mxu0 0
          %708 = vmatprep.subr.bf16.mxu0 0
          %709 = vmatpush1.bf16.msra.mxu0 0
          %710 = vmatprep.subr.bf16.mxu0 0
          %711 = vmatpush1.bf16.msra.mxu0 0
          %712 = vmatprep.subr.bf16.mxu0 0
          %713 = vmatpush1.bf16.msra.mxu0 0
          %714 = vmatprep.subr.bf16.mxu0 0
          %715 = vmatpush1.bf16.msra.mxu0 0
          %716 = vmatprep.subr.bf16.mxu0 0
          %717 = vmatpush1.bf16.msra.mxu0 0
          %718 = vmatprep.subr.bf16.mxu0 0
          %719 = vmatpush1.bf16.msra.mxu0 0
          %720 = vmatprep.subr.bf16.mxu0 0
          %721 = vmatpush1.bf16.msra.mxu0 0
          %722 = vmatprep.subr.bf16.mxu0 0
          %723 = vmatpush1.bf16.msra.mxu0 0
          %724 = vmatprep.subr.bf16.mxu0 0
          %725 = vmatpush1.bf16.msra.mxu0 0
          %726 = vmatprep.subr.bf16.mxu0 0
          %727 = vmatpush1.bf16.msra.mxu0 0
          %728 = vmatprep.subr.bf16.mxu0 0
          %729 = vmatpush1.bf16.msra.mxu0 0
          %730 = vmatprep.mubr.bf16.mxu0 0
          %731 = vmatmul.mubr.bf16.gmra.mrb[0].mxu0 %v681
          %v732 = vpop.f32.mrb[0].mxu0
          %v733 = vadd.f32 0.0, %v732
          %v734 = vpop.f32.mrb[0].mxu0
          %v735 = vadd.f32 0.0, %v734
          %v736 = vpop.f32.mrb[0].mxu0
          %v737 = vadd.f32 0.0, %v736
          %v738 = vpop.f32.mrb[0].mxu0
          %v739 = vadd.f32 0.0, %v738
          %740 = vmatprep.mubr.bf16.mxu0 0
          %741 = vmatmul.mubr.bf16.gmra.mrb[0].mxu0 %v684
          %v742 = vpop.f32.mrb[0].mxu0
          %v743 = vadd.f32 0.0, %v742
          %v744 = vpop.f32.mrb[0].mxu0
          %v745 = vadd.f32 0.0, %v744
          %v746 = vpop.f32.mrb[0].mxu0
          %v747 = vadd.f32 0.0, %v746
          %v748 = vpop.f32.mrb[0].mxu0
          %v749 = vadd.f32 0.0, %v748
          %750 = vdwg.mxu0
          %751 = vmatprep.subr.bf16.mxu0 %v696
          %752 = vmatpush1.bf16.msra.mxu0 %v693
          %753 = vmatprep.subr.bf16.mxu0 0
          %754 = vmatpush1.bf16.msra.mxu0 0
          %755 = vmatprep.subr.bf16.mxu0 0
          %756 = vmatpush1.bf16.msra.mxu0 0
          %757 = vmatprep.subr.bf16.mxu0 0
          %758 = vmatpush1.bf16.msra.mxu0 0
          %759 = vmatprep.subr.bf16.mxu0 0
          %760 = vmatpush1.bf16.msra.mxu0 0
          %761 = vmatprep.subr.bf16.mxu0 0
          %762 = vmatpush1.bf16.msra.mxu0 0
          %763 = vmatprep.subr.bf16.mxu0 0
          %764 = vmatpush1.bf16.msra.mxu0 0
          %765 = vmatprep.subr.bf16.mxu0 0
          %766 = vmatpush1.bf16.msra.mxu0 0
          %767 = vmatprep.subr.bf16.mxu0 0
          %768 = vmatpush1.bf16.msra.mxu0 0
          %769 = vmatprep.subr.bf16.mxu0 0
          %770 = vmatpush1.bf16.msra.mxu0 0
          %771 = vmatprep.subr.bf16.mxu0 0
          %772 = vmatpush1.bf16.msra.mxu0 0
          %773 = vmatprep.subr.bf16.mxu0 0
          %774 = vmatpush1.bf16.msra.mxu0 0
          %775 = vmatprep.subr.bf16.mxu0 0
          %776 = vmatpush1.bf16.msra.mxu0 0
          %777 = vmatprep.subr.bf16.mxu0 0
          %778 = vmatpush1.bf16.msra.mxu0 0
          %779 = vmatprep.subr.bf16.mxu0 0
          %780 = vmatpush1.bf16.msra.mxu0 0
          %781 = vmatprep.subr.bf16.mxu0 0
          %782 = vmatpush1.bf16.msra.mxu0 0
          %783 = vmatprep.mubr.bf16.mxu0 0
          %784 = vmatmul.mubr.bf16.gmra.mrb[0].mxu0 %v681
          %v785 = vpop.f32.mrb[0].mxu0
          %v786 = vadd.f32 0.0, %v785
          %v787 = vpop.f32.mrb[0].mxu0
          %v788 = vadd.f32 0.0, %v787
          %v789 = vpop.f32.mrb[0].mxu0
          %v790 = vadd.f32 0.0, %v789
          %v791 = vpop.f32.mrb[0].mxu0
          %v792 = vadd.f32 0.0, %v791
          %793 = vmatprep.mubr.bf16.mxu0 0
          %794 = vmatmul.mubr.bf16.gmra.mrb[0].mxu0 %v684
          %v795 = vpop.f32.mrb[0].mxu0
          %v796 = vadd.f32 0.0, %v795
          %v797 = vpop.f32.mrb[0].mxu0
          %v798 = vadd.f32 0.0, %v797
          %v799 = vpop.f32.mrb[0].mxu0
          %v800 = vadd.f32 0.0, %v799
          %v801 = vpop.f32.mrb[0].mxu0
          %v802 = vadd.f32 0.0, %v801
          %803 = vdwg.mxu0
          %v804 = vadd.f32 %v590, %v733
          %v805 = vadd.f32 %v592, %v735
          %v806 = vadd.f32 %v643, %v786
          %v807 = vadd.f32 %v645, %v788
          %v808 = vadd.f32 %v594, %v737
          %v809 = vadd.f32 %v596, %v739
          %v810 = vadd.f32 %v647, %v790
          %v811 = vadd.f32 %v649, %v792
          %v812 = vadd.f32 %v600, %v743
          %v813 = vadd.f32 %v602, %v745
          %v814 = vadd.f32 %v653, %v796
          %v815 = vadd.f32 %v655, %v798
          %v816 = vadd.f32 %v604, %v747
          %v817 = vadd.f32 %v606, %v749
          %v818 = vadd.f32 %v657, %v800
          %v819 = vadd.f32 %v659, %v802
          %820 = vrot.lane.b32.xlu0 %v364, 116
          %v821 = vpop.permute.xlu0 %820
          %822 = vrot.lane.b32.xlu0 %v365, 116
          %v823 = vpop.permute.xlu0 %822
          %v825 = vsel %vm411, %v821, 0
          %v828 = vsel %vm411, %v823, 0
          %v831 = vsel %vm418, %v395, 0
          %833 = vmatprep.subr.bf16.mxu0 %v550
          %834 = vmatpush1.bf16.msra.mxu0 %v547
          %835 = vmatprep.subr.bf16.mxu0 0
          %836 = vmatpush1.bf16.msra.mxu0 0
          %837 = vmatprep.subr.bf16.mxu0 0
          %838 = vmatpush1.bf16.msra.mxu0 0
          %839 = vmatprep.subr.bf16.mxu0 0
          %840 = vmatpush1.bf16.msra.mxu0 0
          %841 = vmatprep.subr.bf16.mxu0 0
          %842 = vmatpush1.bf16.msra.mxu0 0
          %843 = vmatprep.subr.bf16.mxu0 0
          %844 = vmatpush1.bf16.msra.mxu0 0
          %845 = vmatprep.subr.bf16.mxu0 0
          %846 = vmatpush1.bf16.msra.mxu0 0
          %847 = vmatprep.subr.bf16.mxu0 0
          %848 = vmatpush1.bf16.msra.mxu0 0
          %849 = vmatprep.subr.bf16.mxu0 0
          %850 = vmatpush1.bf16.msra.mxu0 0
          %851 = vmatprep.subr.bf16.mxu0 0
          %852 = vmatpush1.bf16.msra.mxu0 0
          %853 = vmatprep.subr.bf16.mxu0 0
          %854 = vmatpush1.bf16.msra.mxu0 0
          %855 = vmatprep.subr.bf16.mxu0 0
          %856 = vmatpush1.bf16.msra.mxu0 0
          %857 = vmatprep.subr.bf16.mxu0 0
          %858 = vmatpush1.bf16.msra.mxu0 0
          %859 = vmatprep.subr.bf16.mxu0 0
          %860 = vmatpush1.bf16.msra.mxu0 0
          %861 = vmatprep.subr.bf16.mxu0 0
          %862 = vmatpush1.bf16.msra.mxu0 0
          %863 = vmatprep.subr.bf16.mxu0 0
          %864 = vmatpush1.bf16.msra.mxu0 0
          %865 = vmatprep.mubr.bf16.mxu0 0
          %866 = vmatmul.mubr.bf16.gmra.mrb[0].mxu0 %v825
          %v867 = vpop.f32.mrb[0].mxu0
          %v868 = vadd.f32 0.0, %v867
          %v869 = vpop.f32.mrb[0].mxu0
          %v870 = vadd.f32 0.0, %v869
          %v871 = vpop.f32.mrb[0].mxu0
          %v872 = vadd.f32 0.0, %v871
          %v873 = vpop.f32.mrb[0].mxu0
          %v874 = vadd.f32 0.0, %v873
          %875 = vmatprep.mubr.bf16.mxu0 0
          %876 = vmatmul.mubr.bf16.gmra.mrb[0].mxu0 %v828
          %v877 = vpop.f32.mrb[0].mxu0
          %v878 = vadd.f32 0.0, %v877
          %v879 = vpop.f32.mrb[0].mxu0
          %v880 = vadd.f32 0.0, %v879
          %v881 = vpop.f32.mrb[0].mxu0
          %v882 = vadd.f32 0.0, %v881
          %v883 = vpop.f32.mrb[0].mxu0
          %v884 = vadd.f32 0.0, %v883
          %885 = vdwg.mxu0
          %886 = vmatprep.subr.bf16.mxu0 %v831
          %887 = vmatpush1.bf16.msra.mxu0 %v553
          %888 = vmatprep.subr.bf16.mxu0 0
          %889 = vmatpush1.bf16.msra.mxu0 0
          %890 = vmatprep.subr.bf16.mxu0 0
          %891 = vmatpush1.bf16.msra.mxu0 0
          %892 = vmatprep.subr.bf16.mxu0 0
          %893 = vmatpush1.bf16.msra.mxu0 0
          %894 = vmatprep.subr.bf16.mxu0 0
          %895 = vmatpush1.bf16.msra.mxu0 0
          %896 = vmatprep.subr.bf16.mxu0 0
          %897 = vmatpush1.bf16.msra.mxu0 0
          %898 = vmatprep.subr.bf16.mxu0 0
          %899 = vmatpush1.bf16.msra.mxu0 0
          %900 = vmatprep.subr.bf16.mxu0 0
          %901 = vmatpush1.bf16.msra.mxu0 0
          %902 = vmatprep.subr.bf16.mxu0 0
          %903 = vmatpush1.bf16.msra.mxu0 0
          %904 = vmatprep.subr.bf16.mxu0 0
          %905 = vmatpush1.bf16.msra.mxu0 0
          %906 = vmatprep.subr.bf16.mxu0 0
          %907 = vmatpush1.bf16.msra.mxu0 0
          %908 = vmatprep.subr.bf16.mxu0 0
          %909 = vmatpush1.bf16.msra.mxu0 0
          %910 = vmatprep.subr.bf16.mxu0 0
          %911 = vmatpush1.bf16.msra.mxu0 0
          %912 = vmatprep.subr.bf16.mxu0 0
          %913 = vmatpush1.bf16.msra.mxu0 0
          %914 = vmatprep.subr.bf16.mxu0 0
          %915 = vmatpush1.bf16.msra.mxu0 0
          %916 = vmatprep.subr.bf16.mxu0 0
          %917 = vmatpush1.bf16.msra.mxu0 0
          %918 = vmatprep.mubr.bf16.mxu0 0
          %919 = vmatmul.mubr.bf16.gmra.mrb[0].mxu0 %v825
          %v920 = vpop.f32.mrb[0].mxu0
          %v921 = vadd.f32 0.0, %v920
          %v922 = vpop.f32.mrb[0].mxu0
          %v923 = vadd.f32 0.0, %v922
          %v924 = vpop.f32.mrb[0].mxu0
          %v925 = vadd.f32 0.0, %v924
          %v926 = vpop.f32.mrb[0].mxu0
          %v927 = vadd.f32 0.0, %v926
          %928 = vmatprep.mubr.bf16.mxu0 0
          %929 = vmatmul.mubr.bf16.gmra.mrb[0].mxu0 %v828
          %v930 = vpop.f32.mrb[0].mxu0
          %v931 = vadd.f32 0.0, %v930
          %v932 = vpop.f32.mrb[0].mxu0
          %v933 = vadd.f32 0.0, %v932
          %v934 = vpop.f32.mrb[0].mxu0
          %v935 = vadd.f32 0.0, %v934
          %v936 = vpop.f32.mrb[0].mxu0
          %v937 = vadd.f32 0.0, %v936
          %938 = vdwg.mxu0
          %v939 = vadd.f32 %v804, %v868
          %v940 = vadd.f32 %v805, %v870
          %v941 = vadd.f32 %v806, %v921
          %v942 = vadd.f32 %v807, %v923
          %v943 = vadd.f32 %v808, %v872
          %v944 = vadd.f32 %v809, %v874
          %v945 = vadd.f32 %v810, %v925
          %v946 = vadd.f32 %v811, %v927
          %v947 = vadd.f32 %v812, %v878
          %v948 = vadd.f32 %v813, %v880
          %v949 = vadd.f32 %v814, %v931
          %v950 = vadd.f32 %v815, %v933
          %v951 = vadd.f32 %v816, %v882
          %v952 = vadd.f32 %v817, %v884
          %v953 = vadd.f32 %v818, %v935
          %v954 = vadd.f32 %v819, %v937
          %955 = vrot.lane.b32.xlu0 %v364, 112
          %v956 = vpop.permute.xlu0 %955
          %957 = vrot.lane.b32.xlu0 %v365, 112
          %v958 = vpop.permute.xlu0 %957
          %v959 = vcombine.high %v395, %v395
          %960 = vrot.lane.b32.xlu0 %v959, 127
          %v961 = vpop.permute.xlu0 %960
          %v962 = vsel %vm406, %v405, %v961
          %v964 = vsel %vm411, %v956, 0
          %v967 = vsel %vm411, %v958, 0
          %v970 = vsel %vm418, %v962, 0
          %972 = vmatprep.subr.bf16.mxu0 %v426
          %973 = vmatpush1.bf16.msra.mxu0 %v423
          %974 = vmatprep.subr.bf16.mxu0 0
          %975 = vmatpush1.bf16.msra.mxu0 0
          %976 = vmatprep.subr.bf16.mxu0 0
          %977 = vmatpush1.bf16.msra.mxu0 0
          %978 = vmatprep.subr.bf16.mxu0 0
          %979 = vmatpush1.bf16.msra.mxu0 0
          %980 = vmatprep.subr.bf16.mxu0 0
          %981 = vmatpush1.bf16.msra.mxu0 0
          %982 = vmatprep.subr.bf16.mxu0 0
          %983 = vmatpush1.bf16.msra.mxu0 0
          %984 = vmatprep.subr.bf16.mxu0 0
          %985 = vmatpush1.bf16.msra.mxu0 0
          %986 = vmatprep.subr.bf16.mxu0 0
          %987 = vmatpush1.bf16.msra.mxu0 0
          %988 = vmatprep.subr.bf16.mxu0 0
          %989 = vmatpush1.bf16.msra.mxu0 0
          %990 = vmatprep.subr.bf16.mxu0 0
          %991 = vmatpush1.bf16.msra.mxu0 0
          %992 = vmatprep.subr.bf16.mxu0 0
          %993 = vmatpush1.bf16.msra.mxu0 0
          %994 = vmatprep.subr.bf16.mxu0 0
          %995 = vmatpush1.bf16.msra.mxu0 0
          %996 = vmatprep.subr.bf16.mxu0 0
          %997 = vmatpush1.bf16.msra.mxu0 0
          %998 = vmatprep.subr.bf16.mxu0 0
          %999 = vmatpush1.bf16.msra.mxu0 0
          %1000 = vmatprep.subr.bf16.mxu0 0
          %1001 = vmatpush1.bf16.msra.mxu0 0
          %1002 = vmatprep.subr.bf16.mxu0 0
          %1003 = vmatpush1.bf16.msra.mxu0 0
          %1004 = vmatprep.mubr.bf16.mxu0 0
          %1005 = vmatmul.mubr.bf16.gmra.mrb[0].mxu0 %v964
          %v1006 = vpop.f32.mrb[0].mxu0
          %v1007 = vadd.f32 0.0, %v1006
          %v1008 = vpop.f32.mrb[0].mxu0
          %v1009 = vadd.f32 0.0, %v1008
          %v1010 = vpop.f32.mrb[0].mxu0
          %v1011 = vadd.f32 0.0, %v1010
          %v1012 = vpop.f32.mrb[0].mxu0
          %v1013 = vadd.f32 0.0, %v1012
          %1014 = vmatprep.mubr.bf16.mxu0 0
          %1015 = vmatmul.mubr.bf16.gmra.mrb[0].mxu0 %v967
          %v1016 = vpop.f32.mrb[0].mxu0
          %v1017 = vadd.f32 0.0, %v1016
          %v1018 = vpop.f32.mrb[0].mxu0
          %v1019 = vadd.f32 0.0, %v1018
          %v1020 = vpop.f32.mrb[0].mxu0
          %v1021 = vadd.f32 0.0, %v1020
          %v1022 = vpop.f32.mrb[0].mxu0
          %v1023 = vadd.f32 0.0, %v1022
          %1024 = vdwg.mxu0
          %1025 = vmatprep.subr.bf16.mxu0 %v970
          %1026 = vmatpush1.bf16.msra.mxu0 %v429
          %1027 = vmatprep.subr.bf16.mxu0 0
          %1028 = vmatpush1.bf16.msra.mxu0 0
          %1029 = vmatprep.subr.bf16.mxu0 0
          %1030 = vmatpush1.bf16.msra.mxu0 0
          %1031 = vmatprep.subr.bf16.mxu0 0
          %1032 = vmatpush1.bf16.msra.mxu0 0
          %1033 = vmatprep.subr.bf16.mxu0 0
          %1034 = vmatpush1.bf16.msra.mxu0 0
          %1035 = vmatprep.subr.bf16.mxu0 0
          %1036 = vmatpush1.bf16.msra.mxu0 0
          %1037 = vmatprep.subr.bf16.mxu0 0
          %1038 = vmatpush1.bf16.msra.mxu0 0
          %1039 = vmatprep.subr.bf16.mxu0 0
          %1040 = vmatpush1.bf16.msra.mxu0 0
          %1041 = vmatprep.subr.bf16.mxu0 0
          %1042 = vmatpush1.bf16.msra.mxu0 0
          %1043 = vmatprep.subr.bf16.mxu0 0
          %1044 = vmatpush1.bf16.msra.mxu0 0
          %1045 = vmatprep.subr.bf16.mxu0 0
          %1046 = vmatpush1.bf16.msra.mxu0 0
          %1047 = vmatprep.subr.bf16.mxu0 0
          %1048 = vmatpush1.bf16.msra.mxu0 0
          %1049 = vmatprep.subr.bf16.mxu0 0
          %1050 = vmatpush1.bf16.msra.mxu0 0
          %1051 = vmatprep.subr.bf16.mxu0 0
          %1052 = vmatpush1.bf16.msra.mxu0 0
          %1053 = vmatprep.subr.bf16.mxu0 0
          %1054 = vmatpush1.bf16.msra.mxu0 0
          %1055 = vmatprep.subr.bf16.mxu0 0
          %1056 = vmatpush1.bf16.msra.mxu0 0
          %1057 = vmatprep.mubr.bf16.mxu0 0
          %1058 = vmatmul.mubr.bf16.gmra.mrb[0].mxu0 %v964
          %v1059 = vpop.f32.mrb[0].mxu0
          %v1060 = vadd.f32 0.0, %v1059
          %v1061 = vpop.f32.mrb[0].mxu0
          %v1062 = vadd.f32 0.0, %v1061
          %v1063 = vpop.f32.mrb[0].mxu0
          %v1064 = vadd.f32 0.0, %v1063
          %v1065 = vpop.f32.mrb[0].mxu0
          %v1066 = vadd.f32 0.0, %v1065
          %1067 = vmatprep.mubr.bf16.mxu0 0
          %1068 = vmatmul.mubr.bf16.gmra.mrb[0].mxu0 %v967
          %v1069 = vpop.f32.mrb[0].mxu0
          %v1070 = vadd.f32 0.0, %v1069
          %v1071 = vpop.f32.mrb[0].mxu0
          %v1072 = vadd.f32 0.0, %v1071
          %v1073 = vpop.f32.mrb[0].mxu0
          %v1074 = vadd.f32 0.0, %v1073
          %v1075 = vpop.f32.mrb[0].mxu0
          %v1076 = vadd.f32 0.0, %v1075
          %1077 = vdwg.mxu0
          %v1078 = vadd.f32 %v939, %v1007
          %v1079 = vadd.f32 %v940, %v1009
          %v1080 = vadd.f32 %v941, %v1060
          %v1081 = vadd.f32 %v942, %v1062
          %v1082 = vadd.f32 %v943, %v1011
          %v1083 = vadd.f32 %v944, %v1013
          %v1084 = vadd.f32 %v945, %v1064
          %v1085 = vadd.f32 %v946, %v1066
          %v1086 = vadd.f32 %v947, %v1017
          %v1087 = vadd.f32 %v948, %v1019
          %v1088 = vadd.f32 %v949, %v1070
          %v1089 = vadd.f32 %v950, %v1072
          %v1090 = vadd.f32 %v951, %v1021
          %v1091 = vadd.f32 %v952, %v1023
          %v1092 = vadd.f32 %v953, %v1074
          %v1093 = vadd.f32 %v954, %v1076
          %1094 = vrot.lane.b32.xlu0 %v364, 108
          %v1095 = vpop.permute.xlu0 %1094
          %1096 = vrot.lane.b32.xlu0 %v365, 108
          %v1097 = vpop.permute.xlu0 %1096
          %1098 = vrot.lane.b32.xlu0 %v959, 126
          %v1099 = vpop.permute.xlu0 %1098
          %v1100 = vsel %vm675, %v674, %v1099
          %v1102 = vsel %vm411, %v1095, 0
          %v1105 = vsel %vm411, %v1097, 0
          %v1108 = vsel %vm418, %v1100, 0
          %1110 = vmatprep.subr.bf16.mxu0 %v693
          %1111 = vmatpush1.bf16.msra.mxu0 %v690
          %1112 = vmatprep.subr.bf16.mxu0 0
          %1113 = vmatpush1.bf16.msra.mxu0 0
          %1114 = vmatprep.subr.bf16.mxu0 0
          %1115 = vmatpush1.bf16.msra.mxu0 0
          %1116 = vmatprep.subr.bf16.mxu0 0
          %1117 = vmatpush1.bf16.msra.mxu0 0
          %1118 = vmatprep.subr.bf16.mxu0 0
          %1119 = vmatpush1.bf16.msra.mxu0 0
          %1120 = vmatprep.subr.bf16.mxu0 0
          %1121 = vmatpush1.bf16.msra.mxu0 0
          %1122 = vmatprep.subr.bf16.mxu0 0
          %1123 = vmatpush1.bf16.msra.mxu0 0
          %1124 = vmatprep.subr.bf16.mxu0 0
          %1125 = vmatpush1.bf16.msra.mxu0 0
          %1126 = vmatprep.subr.bf16.mxu0 0
          %1127 = vmatpush1.bf16.msra.mxu0 0
          %1128 = vmatprep.subr.bf16.mxu0 0
          %1129 = vmatpush1.bf16.msra.mxu0 0
          %1130 = vmatprep.subr.bf16.mxu0 0
          %1131 = vmatpush1.bf16.msra.mxu0 0
          %1132 = vmatprep.subr.bf16.mxu0 0
          %1133 = vmatpush1.bf16.msra.mxu0 0
          %1134 = vmatprep.subr.bf16.mxu0 0
          %1135 = vmatpush1.bf16.msra.mxu0 0
          %1136 = vmatprep.subr.bf16.mxu0 0
          %1137 = vmatpush1.bf16.msra.mxu0 0
          %1138 = vmatprep.subr.bf16.mxu0 0
          %1139 = vmatpush1.bf16.msra.mxu0 0
          %1140 = vmatprep.subr.bf16.mxu0 0
          %1141 = vmatpush1.bf16.msra.mxu0 0
          %1142 = vmatprep.mubr.bf16.mxu0 0
          %1143 = vmatmul.mubr.bf16.gmra.mrb[0].mxu0 %v1102
          %v1144 = vpop.f32.mrb[0].mxu0
          %v1145 = vadd.f32 0.0, %v1144
          %v1146 = vpop.f32.mrb[0].mxu0
          %v1147 = vadd.f32 0.0, %v1146
          %v1148 = vpop.f32.mrb[0].mxu0
          %v1149 = vadd.f32 0.0, %v1148
          %v1150 = vpop.f32.mrb[0].mxu0
          %v1151 = vadd.f32 0.0, %v1150
          %1152 = vmatprep.mubr.bf16.mxu0 0
          %1153 = vmatmul.mubr.bf16.gmra.mrb[0].mxu0 %v1105
          %v1154 = vpop.f32.mrb[0].mxu0
          %v1155 = vadd.f32 0.0, %v1154
          %v1156 = vpop.f32.mrb[0].mxu0
          %v1157 = vadd.f32 0.0, %v1156
          %v1158 = vpop.f32.mrb[0].mxu0
          %v1159 = vadd.f32 0.0, %v1158
          %v1160 = vpop.f32.mrb[0].mxu0
          %v1161 = vadd.f32 0.0, %v1160
          %1162 = vdwg.mxu0
          %1163 = vmatprep.subr.bf16.mxu0 %v1108
          %1164 = vmatpush1.bf16.msra.mxu0 %v696
          %1165 = vmatprep.subr.bf16.mxu0 0
          %1166 = vmatpush1.bf16.msra.mxu0 0
          %1167 = vmatprep.subr.bf16.mxu0 0
          %1168 = vmatpush1.bf16.msra.mxu0 0
          %1169 = vmatprep.subr.bf16.mxu0 0
          %1170 = vmatpush1.bf16.msra.mxu0 0
          %1171 = vmatprep.subr.bf16.mxu0 0
          %1172 = vmatpush1.bf16.msra.mxu0 0
          %1173 = vmatprep.subr.bf16.mxu0 0
          %1174 = vmatpush1.bf16.msra.mxu0 0
          %1175 = vmatprep.subr.bf16.mxu0 0
          %1176 = vmatpush1.bf16.msra.mxu0 0
          %1177 = vmatprep.subr.bf16.mxu0 0
          %1178 = vmatpush1.bf16.msra.mxu0 0
          %1179 = vmatprep.subr.bf16.mxu0 0
          %1180 = vmatpush1.bf16.msra.mxu0 0
          %1181 = vmatprep.subr.bf16.mxu0 0
          %1182 = vmatpush1.bf16.msra.mxu0 0
          %1183 = vmatprep.subr.bf16.mxu0 0
          %1184 = vmatpush1.bf16.msra.mxu0 0
          %1185 = vmatprep.subr.bf16.mxu0 0
          %1186 = vmatpush1.bf16.msra.mxu0 0
          %1187 = vmatprep.subr.bf16.mxu0 0
          %1188 = vmatpush1.bf16.msra.mxu0 0
          %1189 = vmatprep.subr.bf16.mxu0 0
          %1190 = vmatpush1.bf16.msra.mxu0 0
          %1191 = vmatprep.subr.bf16.mxu0 0
          %1192 = vmatpush1.bf16.msra.mxu0 0
          %1193 = vmatprep.subr.bf16.mxu0 0
          %1194 = vmatpush1.bf16.msra.mxu0 0
          %1195 = vmatprep.mubr.bf16.mxu0 0
          %1196 = vmatmul.mubr.bf16.gmra.mrb[0].mxu0 %v1102
          %v1197 = vpop.f32.mrb[0].mxu0
          %v1198 = vadd.f32 0.0, %v1197
          %v1199 = vpop.f32.mrb[0].mxu0
          %v1200 = vadd.f32 0.0, %v1199
          %v1201 = vpop.f32.mrb[0].mxu0
          %v1202 = vadd.f32 0.0, %v1201
          %v1203 = vpop.f32.mrb[0].mxu0
          %v1204 = vadd.f32 0.0, %v1203
          %1205 = vmatprep.mubr.bf16.mxu0 0
          %1206 = vmatmul.mubr.bf16.gmra.mrb[0].mxu0 %v1105
          %v1207 = vpop.f32.mrb[0].mxu0
          %v1208 = vadd.f32 0.0, %v1207
          %v1209 = vpop.f32.mrb[0].mxu0
          %v1210 = vadd.f32 0.0, %v1209
          %v1211 = vpop.f32.mrb[0].mxu0
          %v1212 = vadd.f32 0.0, %v1211
          %v1213 = vpop.f32.mrb[0].mxu0
          %v1214 = vadd.f32 0.0, %v1213
          %1215 = vdwg.mxu0
          %v1216 = vadd.f32 %v1078, %v1145
          %v1217 = vadd.f32 %v1079, %v1147
          %v1218 = vadd.f32 %v1080, %v1198
          %v1219 = vadd.f32 %v1081, %v1200
          %v1220 = vadd.f32 %v1082, %v1149
          %v1221 = vadd.f32 %v1083, %v1151
          %v1222 = vadd.f32 %v1084, %v1202
          %v1223 = vadd.f32 %v1085, %v1204
          %v1224 = vadd.f32 %v1086, %v1155
          %v1225 = vadd.f32 %v1087, %v1157
          %v1226 = vadd.f32 %v1088, %v1208
          %v1227 = vadd.f32 %v1089, %v1210
          %v1228 = vadd.f32 %v1090, %v1159
          %v1229 = vadd.f32 %v1091, %v1161
          %v1230 = vadd.f32 %v1092, %v1212
          %v1231 = vadd.f32 %v1093, %v1214
          %1232 = vrot.lane.b32.xlu0 %v364, 104
          %v1233 = vpop.permute.xlu0 %1232
          %1234 = vrot.lane.b32.xlu0 %v365, 104
          %v1235 = vpop.permute.xlu0 %1234
          %v1237 = vsel %vm411, %v1233, 0
          %v1240 = vsel %vm411, %v1235, 0
          %v1243 = vsel %vm418, %v959, 0
          %1245 = vmatprep.subr.bf16.mxu0 %v553
          %1246 = vmatpush1.bf16.msra.mxu0 %v550
          %1247 = vmatprep.subr.bf16.mxu0 0
          %1248 = vmatpush1.bf16.msra.mxu0 0
          %1249 = vmatprep.subr.bf16.mxu0 0
          %1250 = vmatpush1.bf16.msra.mxu0 0
          %1251 = vmatprep.subr.bf16.mxu0 0
          %1252 = vmatpush1.bf16.msra.mxu0 0
          %1253 = vmatprep.subr.bf16.mxu0 0
          %1254 = vmatpush1.bf16.msra.mxu0 0
          %1255 = vmatprep.subr.bf16.mxu0 0
          %1256 = vmatpush1.bf16.msra.mxu0 0
          %1257 = vmatprep.subr.bf16.mxu0 0
          %1258 = vmatpush1.bf16.msra.mxu0 0
          %1259 = vmatprep.subr.bf16.mxu0 0
          %1260 = vmatpush1.bf16.msra.mxu0 0
          %1261 = vmatprep.subr.bf16.mxu0 0
          %1262 = vmatpush1.bf16.msra.mxu0 0
          %1263 = vmatprep.subr.bf16.mxu0 0
          %1264 = vmatpush1.bf16.msra.mxu0 0
          %1265 = vmatprep.subr.bf16.mxu0 0
          %1266 = vmatpush1.bf16.msra.mxu0 0
          %1267 = vmatprep.subr.bf16.mxu0 0
          %1268 = vmatpush1.bf16.msra.mxu0 0
          %1269 = vmatprep.subr.bf16.mxu0 0
          %1270 = vmatpush1.bf16.msra.mxu0 0
          %1271 = vmatprep.subr.bf16.mxu0 0
          %1272 = vmatpush1.bf16.msra.mxu0 0
          %1273 = vmatprep.subr.bf16.mxu0 0
          %1274 = vmatpush1.bf16.msra.mxu0 0
          %1275 = vmatprep.subr.bf16.mxu0 0
          %1276 = vmatpush1.bf16.msra.mxu0 0
          %1277 = vmatprep.mubr.bf16.mxu0 0
          %1278 = vmatmul.mubr.bf16.gmra.mrb[0].mxu0 %v1237
          %v1279 = vpop.f32.mrb[0].mxu0
          %v1280 = vadd.f32 0.0, %v1279
          %v1281 = vpop.f32.mrb[0].mxu0
          %v1282 = vadd.f32 0.0, %v1281
          %v1283 = vpop.f32.mrb[0].mxu0
          %v1284 = vadd.f32 0.0, %v1283
          %v1285 = vpop.f32.mrb[0].mxu0
          %v1286 = vadd.f32 0.0, %v1285
          %1287 = vmatprep.mubr.bf16.mxu0 0
          %1288 = vmatmul.mubr.bf16.gmra.mrb[0].mxu0 %v1240
          %v1289 = vpop.f32.mrb[0].mxu0
          %v1290 = vadd.f32 0.0, %v1289
          %v1291 = vpop.f32.mrb[0].mxu0
          %v1292 = vadd.f32 0.0, %v1291
          %v1293 = vpop.f32.mrb[0].mxu0
          %v1294 = vadd.f32 0.0, %v1293
          %v1295 = vpop.f32.mrb[0].mxu0
          %v1296 = vadd.f32 0.0, %v1295
          %1297 = vdwg.mxu0
          %1298 = vmatprep.subr.bf16.mxu0 %v1243
          %1299 = vmatpush1.bf16.msra.mxu0 %v831
          %1300 = vmatprep.subr.bf16.mxu0 0
          %1301 = vmatpush1.bf16.msra.mxu0 0
          %1302 = vmatprep.subr.bf16.mxu0 0
          %1303 = vmatpush1.bf16.msra.mxu0 0
          %1304 = vmatprep.subr.bf16.mxu0 0
          %1305 = vmatpush1.bf16.msra.mxu0 0
          %1306 = vmatprep.subr.bf16.mxu0 0
          %1307 = vmatpush1.bf16.msra.mxu0 0
          %1308 = vmatprep.subr.bf16.mxu0 0
          %1309 = vmatpush1.bf16.msra.mxu0 0
          %1310 = vmatprep.subr.bf16.mxu0 0
          %1311 = vmatpush1.bf16.msra.mxu0 0
          %1312 = vmatprep.subr.bf16.mxu0 0
          %1313 = vmatpush1.bf16.msra.mxu0 0
          %1314 = vmatprep.subr.bf16.mxu0 0
          %1315 = vmatpush1.bf16.msra.mxu0 0
          %1316 = vmatprep.subr.bf16.mxu0 0
          %1317 = vmatpush1.bf16.msra.mxu0 0
          %1318 = vmatprep.subr.bf16.mxu0 0
          %1319 = vmatpush1.bf16.msra.mxu0 0
          %1320 = vmatprep.subr.bf16.mxu0 0
          %1321 = vmatpush1.bf16.msra.mxu0 0
          %1322 = vmatprep.subr.bf16.mxu0 0
          %1323 = vmatpush1.bf16.msra.mxu0 0
          %1324 = vmatprep.subr.bf16.mxu0 0
          %1325 = vmatpush1.bf16.msra.mxu0 0
          %1326 = vmatprep.subr.bf16.mxu0 0
          %1327 = vmatpush1.bf16.msra.mxu0 0
          %1328 = vmatprep.subr.bf16.mxu0 0
          %1329 = vmatpush1.bf16.msra.mxu0 0
          %1330 = vmatprep.mubr.bf16.mxu0 0
          %1331 = vmatmul.mubr.bf16.gmra.mrb[0].mxu0 %v1237
          %v1332 = vpop.f32.mrb[0].mxu0
          %v1333 = vadd.f32 0.0, %v1332
          %v1334 = vpop.f32.mrb[0].mxu0
          %v1335 = vadd.f32 0.0, %v1334
          %v1336 = vpop.f32.mrb[0].mxu0
          %v1337 = vadd.f32 0.0, %v1336
          %v1338 = vpop.f32.mrb[0].mxu0
          %v1339 = vadd.f32 0.0, %v1338
          %1340 = vmatprep.mubr.bf16.mxu0 0
          %1341 = vmatmul.mubr.bf16.gmra.mrb[0].mxu0 %v1240
          %v1342 = vpop.f32.mrb[0].mxu0
          %v1343 = vadd.f32 0.0, %v1342
          %v1344 = vpop.f32.mrb[0].mxu0
          %v1345 = vadd.f32 0.0, %v1344
          %v1346 = vpop.f32.mrb[0].mxu0
          %v1347 = vadd.f32 0.0, %v1346
          %v1348 = vpop.f32.mrb[0].mxu0
          %v1349 = vadd.f32 0.0, %v1348
          %1350 = vdwg.mxu0
          %v1351 = vadd.f32 %v1216, %v1280
          %v1352 = vadd.f32 %v1217, %v1282
          %v1353 = vadd.f32 %v1218, %v1333
          %v1354 = vadd.f32 %v1219, %v1335
          %v1355 = vadd.f32 %v1220, %v1284
          %v1356 = vadd.f32 %v1221, %v1286
          %v1357 = vadd.f32 %v1222, %v1337
          %v1358 = vadd.f32 %v1223, %v1339
          %v1359 = vadd.f32 %v1224, %v1290
          %v1360 = vadd.f32 %v1225, %v1292
          %v1361 = vadd.f32 %v1226, %v1343
          %v1362 = vadd.f32 %v1227, %v1345
          %v1363 = vadd.f32 %v1228, %v1294
          %v1364 = vadd.f32 %v1229, %v1296
          %v1365 = vadd.f32 %v1230, %v1347
          %v1366 = vadd.f32 %v1231, %v1349
          %1367 = vrot.lane.b32.xlu0 %v364, 100
          %v1368 = vpop.permute.xlu0 %1367
          %1369 = vrot.lane.b32.xlu0 %v365, 100
          %v1370 = vpop.permute.xlu0 %1369
          %v1371 = vcombine.high %v355, %v355
          %v1373 = vunpack.c.l.s4 1983009808
          %v1374 = vunpack.c.0.s8 %v1373
          %v1375 = vlaneseq
          %v1376 = vshrl.u32 %v1375, 7
          %v1377 = vsub.s32 %v1374, %v1376
          %v1378 = vrot.slane %v1371, %v1377
          %1379 = vrot.lane.b32.xlu0 %v1378, 127
          %v1380 = vpop.permute.xlu0 %1379
          %v1381 = vsel %vm406, %v961, %v1380
          %v1383 = vsel %vm411, %v1368, 0
          %v1386 = vsel %vm411, %v1370, 0
          %v1389 = vsel %vm418, %v1381, 0
          %1391 = vmatprep.subr.bf16.mxu0 %v429
          %1392 = vmatpush1.bf16.msra.mxu0 %v426
          %1393 = vmatprep.subr.bf16.mxu0 0
          %1394 = vmatpush1.bf16.msra.mxu0 0
          %1395 = vmatprep.subr.bf16.mxu0 0
          %1396 = vmatpush1.bf16.msra.mxu0 0
          %1397 = vmatprep.subr.bf16.mxu0 0
          %1398 = vmatpush1.bf16.msra.mxu0 0
          %1399 = vmatprep.subr.bf16.mxu0 0
          %1400 = vmatpush1.bf16.msra.mxu0 0
          %1401 = vmatprep.subr.bf16.mxu0 0
          %1402 = vmatpush1.bf16.msra.mxu0 0
          %1403 = vmatprep.subr.bf16.mxu0 0
          %1404 = vmatpush1.bf16.msra.mxu0 0
          %1405 = vmatprep.subr.bf16.mxu0 0
          %1406 = vmatpush1.bf16.msra.mxu0 0
          %1407 = vmatprep.subr.bf16.mxu0 0
          %1408 = vmatpush1.bf16.msra.mxu0 0
          %1409 = vmatprep.subr.bf16.mxu0 0
          %1410 = vmatpush1.bf16.msra.mxu0 0
          %1411 = vmatprep.subr.bf16.mxu0 0
          %1412 = vmatpush1.bf16.msra.mxu0 0
          %1413 = vmatprep.subr.bf16.mxu0 0
          %1414 = vmatpush1.bf16.msra.mxu0 0
          %1415 = vmatprep.subr.bf16.mxu0 0
          %1416 = vmatpush1.bf16.msra.mxu0 0
          %1417 = vmatprep.subr.bf16.mxu0 0
          %1418 = vmatpush1.bf16.msra.mxu0 0
          %1419 = vmatprep.subr.bf16.mxu0 0
          %1420 = vmatpush1.bf16.msra.mxu0 0
          %1421 = vmatprep.subr.bf16.mxu0 0
          %1422 = vmatpush1.bf16.msra.mxu0 0
          %1423 = vmatprep.mubr.bf16.mxu0 0
          %1424 = vmatmul.mubr.bf16.gmra.mrb[0].mxu0 %v1383
          %v1425 = vpop.f32.mrb[0].mxu0
          %v1426 = vadd.f32 0.0, %v1425
          %v1427 = vpop.f32.mrb[0].mxu0
          %v1428 = vadd.f32 0.0, %v1427
          %v1429 = vpop.f32.mrb[0].mxu0
          %v1430 = vadd.f32 0.0, %v1429
          %v1431 = vpop.f32.mrb[0].mxu0
          %v1432 = vadd.f32 0.0, %v1431
          %1433 = vmatprep.mubr.bf16.mxu0 0
          %1434 = vmatmul.mubr.bf16.gmra.mrb[0].mxu0 %v1386
          %v1435 = vpop.f32.mrb[0].mxu0
          %v1436 = vadd.f32 0.0, %v1435
          %v1437 = vpop.f32.mrb[0].mxu0
          %v1438 = vadd.f32 0.0, %v1437
          %v1439 = vpop.f32.mrb[0].mxu0
          %v1440 = vadd.f32 0.0, %v1439
          %v1441 = vpop.f32.mrb[0].mxu0
          %v1442 = vadd.f32 0.0, %v1441
          %1443 = vdwg.mxu0
          %1444 = vmatprep.subr.bf16.mxu0 %v1389
          %1445 = vmatpush1.bf16.msra.mxu0 %v970
          %1446 = vmatprep.subr.bf16.mxu0 0
          %1447 = vmatpush1.bf16.msra.mxu0 0
          %1448 = vmatprep.subr.bf16.mxu0 0
          %1449 = vmatpush1.bf16.msra.mxu0 0
          %1450 = vmatprep.subr.bf16.mxu0 0
          %1451 = vmatpush1.bf16.msra.mxu0 0
          %1452 = vmatprep.subr.bf16.mxu0 0
          %1453 = vmatpush1.bf16.msra.mxu0 0
          %1454 = vmatprep.subr.bf16.mxu0 0
          %1455 = vmatpush1.bf16.msra.mxu0 0
          %1456 = vmatprep.subr.bf16.mxu0 0
          %1457 = vmatpush1.bf16.msra.mxu0 0
          %1458 = vmatprep.subr.bf16.mxu0 0
          %1459 = vmatpush1.bf16.msra.mxu0 0
          %1460 = vmatprep.subr.bf16.mxu0 0
          %1461 = vmatpush1.bf16.msra.mxu0 0
          %1462 = vmatprep.subr.bf16.mxu0 0
          %1463 = vmatpush1.bf16.msra.mxu0 0
          %1464 = vmatprep.subr.bf16.mxu0 0
          %1465 = vmatpush1.bf16.msra.mxu0 0
          %1466 = vmatprep.subr.bf16.mxu0 0
          %1467 = vmatpush1.bf16.msra.mxu0 0
          %1468 = vmatprep.subr.bf16.mxu0 0
          %1469 = vmatpush1.bf16.msra.mxu0 0
          %1470 = vmatprep.subr.bf16.mxu0 0
          %1471 = vmatpush1.bf16.msra.mxu0 0
          %1472 = vmatprep.subr.bf16.mxu0 0
          %1473 = vmatpush1.bf16.msra.mxu0 0
          %1474 = vmatprep.subr.bf16.mxu0 0
          %1475 = vmatpush1.bf16.msra.mxu0 0
          %1476 = vmatprep.mubr.bf16.mxu0 0
          %1477 = vmatmul.mubr.bf16.gmra.mrb[0].mxu0 %v1383
          %v1478 = vpop.f32.mrb[0].mxu0
          %v1479 = vadd.f32 0.0, %v1478
          %v1480 = vpop.f32.mrb[0].mxu0
          %v1481 = vadd.f32 0.0, %v1480
          %v1482 = vpop.f32.mrb[0].mxu0
          %v1483 = vadd.f32 0.0, %v1482
          %v1484 = vpop.f32.mrb[0].mxu0
          %v1485 = vadd.f32 0.0, %v1484
          %1486 = vmatprep.mubr.bf16.mxu0 0
          %1487 = vmatmul.mubr.bf16.gmra.mrb[0].mxu0 %v1386
          %v1488 = vpop.f32.mrb[0].mxu0
          %v1489 = vadd.f32 0.0, %v1488
          %v1490 = vpop.f32.mrb[0].mxu0
          %v1491 = vadd.f32 0.0, %v1490
          %v1492 = vpop.f32.mrb[0].mxu0
          %v1493 = vadd.f32 0.0, %v1492
          %v1494 = vpop.f32.mrb[0].mxu0
          %v1495 = vadd.f32 0.0, %v1494
          %1496 = vdwg.mxu0
          %v1497 = vadd.f32 %v1351, %v1426
          %v1498 = vadd.f32 %v1352, %v1428
          %v1499 = vadd.f32 %v1353, %v1479
          %v1500 = vadd.f32 %v1354, %v1481
          %v1501 = vadd.f32 %v1355, %v1430
          %v1502 = vadd.f32 %v1356, %v1432
          %v1503 = vadd.f32 %v1357, %v1483
          %v1504 = vadd.f32 %v1358, %v1485
          %v1505 = vadd.f32 %v1359, %v1436
          %v1506 = vadd.f32 %v1360, %v1438
          %v1507 = vadd.f32 %v1361, %v1489
          %v1508 = vadd.f32 %v1362, %v1491
          %v1509 = vadd.f32 %v1363, %v1440
          %v1510 = vadd.f32 %v1364, %v1442
          %v1511 = vadd.f32 %v1365, %v1493
          %v1512 = vadd.f32 %v1366, %v1495
          %1513 = vrot.lane.b32.xlu0 %v364, 96
          %v1514 = vpop.permute.xlu0 %1513
          %1515 = vrot.lane.b32.xlu0 %v365, 96
          %v1516 = vpop.permute.xlu0 %1515
          %1517 = vrot.lane.b32.xlu0 %v1378, 126
          %v1518 = vpop.permute.xlu0 %1517
          %v1519 = vsel %vm675, %v1099, %v1518
          %v1521 = vsel %vm411, %v1514, 0
          %v1524 = vsel %vm411, %v1516, 0
          %v1527 = vsel %vm418, %v1519, 0
          %1529 = vmatprep.subr.bf16.mxu0 %v696
          %1530 = vmatpush1.bf16.msra.mxu0 %v693
          %1531 = vmatprep.subr.bf16.mxu0 0
          %1532 = vmatpush1.bf16.msra.mxu0 0
          %1533 = vmatprep.subr.bf16.mxu0 0
          %1534 = vmatpush1.bf16.msra.mxu0 0
          %1535 = vmatprep.subr.bf16.mxu0 0
          %1536 = vmatpush1.bf16.msra.mxu0 0
          %1537 = vmatprep.subr.bf16.mxu0 0
          %1538 = vmatpush1.bf16.msra.mxu0 0
          %1539 = vmatprep.subr.bf16.mxu0 0
          %1540 = vmatpush1.bf16.msra.mxu0 0
          %1541 = vmatprep.subr.bf16.mxu0 0
          %1542 = vmatpush1.bf16.msra.mxu0 0
          %1543 = vmatprep.subr.bf16.mxu0 0
          %1544 = vmatpush1.bf16.msra.mxu0 0
          %1545 = vmatprep.subr.bf16.mxu0 0
          %1546 = vmatpush1.bf16.msra.mxu0 0
          %1547 = vmatprep.subr.bf16.mxu0 0
          %1548 = vmatpush1.bf16.msra.mxu0 0
          %1549 = vmatprep.subr.bf16.mxu0 0
          %1550 = vmatpush1.bf16.msra.mxu0 0
          %1551 = vmatprep.subr.bf16.mxu0 0
          %1552 = vmatpush1.bf16.msra.mxu0 0
          %1553 = vmatprep.subr.bf16.mxu0 0
          %1554 = vmatpush1.bf16.msra.mxu0 0
          %1555 = vmatprep.subr.bf16.mxu0 0
          %1556 = vmatpush1.bf16.msra.mxu0 0
          %1557 = vmatprep.subr.bf16.mxu0 0
          %1558 = vmatpush1.bf16.msra.mxu0 0
          %1559 = vmatprep.subr.bf16.mxu0 0
          %1560 = vmatpush1.bf16.msra.mxu0 0
          %1561 = vmatprep.mubr.bf16.mxu0 0
          %1562 = vmatmul.mubr.bf16.gmra.mrb[0].mxu0 %v1521
          %v1563 = vpop.f32.mrb[0].mxu0
          %v1564 = vadd.f32 0.0, %v1563
          %v1565 = vpop.f32.mrb[0].mxu0
          %v1566 = vadd.f32 0.0, %v1565
          %v1567 = vpop.f32.mrb[0].mxu0
          %v1568 = vadd.f32 0.0, %v1567
          %v1569 = vpop.f32.mrb[0].mxu0
          %v1570 = vadd.f32 0.0, %v1569
          %1571 = vmatprep.mubr.bf16.mxu0 0
          %1572 = vmatmul.mubr.bf16.gmra.mrb[0].mxu0 %v1524
          %v1573 = vpop.f32.mrb[0].mxu0
          %v1574 = vadd.f32 0.0, %v1573
          %v1575 = vpop.f32.mrb[0].mxu0
          %v1576 = vadd.f32 0.0, %v1575
          %v1577 = vpop.f32.mrb[0].mxu0
          %v1578 = vadd.f32 0.0, %v1577
          %v1579 = vpop.f32.mrb[0].mxu0
          %v1580 = vadd.f32 0.0, %v1579
          %1581 = vdwg.mxu0
          %1582 = vmatprep.subr.bf16.mxu0 %v1527
          %1583 = vmatpush1.bf16.msra.mxu0 %v1108
          %1584 = vmatprep.subr.bf16.mxu0 0
          %1585 = vmatpush1.bf16.msra.mxu0 0
          %1586 = vmatprep.subr.bf16.mxu0 0
          %1587 = vmatpush1.bf16.msra.mxu0 0
          %1588 = vmatprep.subr.bf16.mxu0 0
          %1589 = vmatpush1.bf16.msra.mxu0 0
          %1590 = vmatprep.subr.bf16.mxu0 0
          %1591 = vmatpush1.bf16.msra.mxu0 0
          %1592 = vmatprep.subr.bf16.mxu0 0
          %1593 = vmatpush1.bf16.msra.mxu0 0
          %1594 = vmatprep.subr.bf16.mxu0 0
          %1595 = vmatpush1.bf16.msra.mxu0 0
          %1596 = vmatprep.subr.bf16.mxu0 0
          %1597 = vmatpush1.bf16.msra.mxu0 0
          %1598 = vmatprep.subr.bf16.mxu0 0
          %1599 = vmatpush1.bf16.msra.mxu0 0
          %1600 = vmatprep.subr.bf16.mxu0 0
          %1601 = vmatpush1.bf16.msra.mxu0 0
          %1602 = vmatprep.subr.bf16.mxu0 0
          %1603 = vmatpush1.bf16.msra.mxu0 0
          %1604 = vmatprep.subr.bf16.mxu0 0
          %1605 = vmatpush1.bf16.msra.mxu0 0
          %1606 = vmatprep.subr.bf16.mxu0 0
          %1607 = vmatpush1.bf16.msra.mxu0 0
          %1608 = vmatprep.subr.bf16.mxu0 0
          %1609 = vmatpush1.bf16.msra.mxu0 0
          %1610 = vmatprep.subr.bf16.mxu0 0
          %1611 = vmatpush1.bf16.msra.mxu0 0
          %1612 = vmatprep.subr.bf16.mxu0 0
          %1613 = vmatpush1.bf16.msra.mxu0 0
          %1614 = vmatprep.mubr.bf16.mxu0 0
          %1615 = vmatmul.mubr.bf16.gmra.mrb[0].mxu0 %v1521
          %v1616 = vpop.f32.mrb[0].mxu0
          %v1617 = vadd.f32 0.0, %v1616
          %v1618 = vpop.f32.mrb[0].mxu0
          %v1619 = vadd.f32 0.0, %v1618
          %v1620 = vpop.f32.mrb[0].mxu0
          %v1621 = vadd.f32 0.0, %v1620
          %v1622 = vpop.f32.mrb[0].mxu0
          %v1623 = vadd.f32 0.0, %v1622
          %1624 = vmatprep.mubr.bf16.mxu0 0
          %1625 = vmatmul.mubr.bf16.gmra.mrb[0].mxu0 %v1524
          %v1626 = vpop.f32.mrb[0].mxu0
          %v1627 = vadd.f32 0.0, %v1626
          %v1628 = vpop.f32.mrb[0].mxu0
          %v1629 = vadd.f32 0.0, %v1628
          %v1630 = vpop.f32.mrb[0].mxu0
          %v1631 = vadd.f32 0.0, %v1630
          %v1632 = vpop.f32.mrb[0].mxu0
          %v1633 = vadd.f32 0.0, %v1632
          %1634 = vdwg.mxu0
          %v1635 = vadd.f32 %v1497, %v1564
          %v1636 = vadd.f32 %v1498, %v1566
          %v1637 = vadd.f32 %v1499, %v1617
          %v1638 = vadd.f32 %v1500, %v1619
          %v1639 = vadd.f32 %v1501, %v1568
          %v1640 = vadd.f32 %v1502, %v1570
          %v1641 = vadd.f32 %v1503, %v1621
          %v1642 = vadd.f32 %v1504, %v1623
          %v1643 = vadd.f32 %v1505, %v1574
          %v1644 = vadd.f32 %v1506, %v1576
          %v1645 = vadd.f32 %v1507, %v1627
          %v1646 = vadd.f32 %v1508, %v1629
          %v1647 = vadd.f32 %v1509, %v1578
          %v1648 = vadd.f32 %v1510, %v1580
          %v1649 = vadd.f32 %v1511, %v1631
          %v1650 = vadd.f32 %v1512, %v1633
          %1652 = vset.pattern.permute.xlu0 0
          %1653 = vperm.xlu0 %1652, %v322
          %v1654 = vpop.permute.xlu0 %1653
          %1657 = vset.pattern.permute.xlu0 0
          %1658 = vperm.xlu0 %1657, %v323
          %v1659 = vpop.permute.xlu0 %1658
          %1662 = vset.pattern.permute.xlu0 0
          %1663 = vperm.xlu0 %1662, %v324
          %v1664 = vpop.permute.xlu0 %1663
          %1667 = vset.pattern.permute.xlu0 0
          %1668 = vperm.xlu0 %1667, %v325
          %v1669 = vpop.permute.xlu0 %1668
          %v1671 = vadd.f32 %v1635, %v1654
          %v1672 = vadd.f32 %v1636, %v1654
          %v1673 = vadd.f32 %v1637, %v1654
          %v1674 = vadd.f32 %v1638, %v1654
          %v1675 = vadd.f32 %v1639, %v1659
          %v1676 = vadd.f32 %v1640, %v1659
          %v1677 = vadd.f32 %v1641, %v1659
          %v1678 = vadd.f32 %v1642, %v1659
          %v1679 = vadd.f32 %v1643, %v1664
          %v1680 = vadd.f32 %v1644, %v1664
          %v1681 = vadd.f32 %v1645, %v1664
          %v1682 = vadd.f32 %v1646, %v1664
          %v1683 = vadd.f32 %v1647, %v1669
          %v1684 = vadd.f32 %v1648, %v1669
          %v1685 = vadd.f32 %v1649, %v1669
          %v1686 = vadd.f32 %v1650, %v1669
          %v1687 = vxor.u32 %v1671, 2147483648
          %v1688 = vxor.u32 %v1672, 2147483648
          %v1689 = vxor.u32 %v1673, 2147483648
          %v1690 = vxor.u32 %v1674, 2147483648
          %v1691 = vxor.u32 %v1675, 2147483648
          %v1692 = vxor.u32 %v1676, 2147483648
          %v1693 = vxor.u32 %v1677, 2147483648
          %v1694 = vxor.u32 %v1678, 2147483648
          %v1695 = vxor.u32 %v1679, 2147483648
          %v1696 = vxor.u32 %v1680, 2147483648
          %v1697 = vxor.u32 %v1681, 2147483648
          %v1698 = vxor.u32 %v1682, 2147483648
          %v1699 = vxor.u32 %v1683, 2147483648
          %v1700 = vxor.u32 %v1684, 2147483648
          %v1701 = vxor.u32 %v1685, 2147483648
          %v1702 = vxor.u32 %v1686, 2147483648
          %v1703 = vmul.f32 %v1687, 1.442695
          %v1704 = vpow.pop %v1703
          %v1705 = vmul.f32 %v1688, 1.442695
          %v1706 = vpow.pop %v1705
          %v1707 = vmul.f32 %v1689, 1.442695
          %v1708 = vpow.pop %v1707
          %v1709 = vmul.f32 %v1690, 1.442695
          %v1710 = vpow.pop %v1709
          %v1711 = vmul.f32 %v1691, 1.442695
          %v1712 = vpow.pop %v1711
          %v1713 = vmul.f32 %v1692, 1.442695
          %v1714 = vpow.pop %v1713
          %v1715 = vmul.f32 %v1693, 1.442695
          %v1716 = vpow.pop %v1715
          %v1717 = vmul.f32 %v1694, 1.442695
          %v1718 = vpow.pop %v1717
          %v1719 = vmul.f32 %v1695, 1.442695
          %v1720 = vpow.pop %v1719
          %v1721 = vmul.f32 %v1696, 1.442695
          %v1722 = vpow.pop %v1721
          %v1723 = vmul.f32 %v1697, 1.442695
          %v1724 = vpow.pop %v1723
          %v1725 = vmul.f32 %v1698, 1.442695
          %v1726 = vpow.pop %v1725
          %v1727 = vmul.f32 %v1699, 1.442695
          %v1728 = vpow.pop %v1727
          %v1729 = vmul.f32 %v1700, 1.442695
          %v1730 = vpow.pop %v1729
          %v1731 = vmul.f32 %v1701, 1.442695
          %v1732 = vpow.pop %v1731
          %v1733 = vmul.f32 %v1702, 1.442695
          %v1734 = vpow.pop %v1733
          %v1735 = vadd.f32 %v1704, 1.0
          %v1736 = vadd.f32 %v1706, 1.0
          %v1737 = vadd.f32 %v1708, 1.0
          %v1738 = vadd.f32 %v1710, 1.0
          %v1739 = vadd.f32 %v1712, 1.0
          %v1740 = vadd.f32 %v1714, 1.0
          %v1741 = vadd.f32 %v1716, 1.0
          %v1742 = vadd.f32 %v1718, 1.0
          %v1743 = vadd.f32 %v1720, 1.0
          %v1744 = vadd.f32 %v1722, 1.0
          %v1745 = vadd.f32 %v1724, 1.0
          %v1746 = vadd.f32 %v1726, 1.0
          %v1747 = vadd.f32 %v1728, 1.0
          %v1748 = vadd.f32 %v1730, 1.0
          %v1749 = vadd.f32 %v1732, 1.0
          %v1750 = vadd.f32 %v1734, 1.0
          %v1751 = vrcp.pop %v1735
          %v1752 = vmul.f32 1.0, %v1751
          %v1753 = vrcp.pop %v1736
          %v1754 = vmul.f32 1.0, %v1753
          %v1755 = vrcp.pop %v1737
          %v1756 = vmul.f32 1.0, %v1755
          %v1757 = vrcp.pop %v1738
          %v1758 = vmul.f32 1.0, %v1757
          %v1759 = vrcp.pop %v1739
          %v1760 = vmul.f32 1.0, %v1759
          %v1761 = vrcp.pop %v1740
          %v1762 = vmul.f32 1.0, %v1761
          %v1763 = vrcp.pop %v1741
          %v1764 = vmul.f32 1.0, %v1763
          %v1765 = vrcp.pop %v1742
          %v1766 = vmul.f32 1.0, %v1765
          %v1767 = vrcp.pop %v1743
          %v1768 = vmul.f32 1.0, %v1767
          %v1769 = vrcp.pop %v1744
          %v1770 = vmul.f32 1.0, %v1769
          %v1771 = vrcp.pop %v1745
          %v1772 = vmul.f32 1.0, %v1771
          %v1773 = vrcp.pop %v1746
          %v1774 = vmul.f32 1.0, %v1773
          %v1775 = vrcp.pop %v1747
          %v1776 = vmul.f32 1.0, %v1775
          %v1777 = vrcp.pop %v1748
          %v1778 = vmul.f32 1.0, %v1777
          %v1779 = vrcp.pop %v1749
          %v1780 = vmul.f32 1.0, %v1779
          %v1781 = vrcp.pop %v1750
          %v1782 = vmul.f32 1.0, %v1781
          %v1783 = vmul.f32 %v1671, %v1752
          %v1784 = vmul.f32 %v1672, %v1754
          %v1785 = vmul.f32 %v1673, %v1756
          %v1786 = vmul.f32 %v1674, %v1758
          %v1787 = vmul.f32 %v1675, %v1760
          %v1788 = vmul.f32 %v1676, %v1762
          %v1789 = vmul.f32 %v1677, %v1764
          %v1790 = vmul.f32 %v1678, %v1766
          %v1791 = vmul.f32 %v1679, %v1768
          %v1792 = vmul.f32 %v1680, %v1770
          %v1793 = vmul.f32 %v1681, %v1772
          %v1794 = vmul.f32 %v1682, %v1774
          %v1795 = vmul.f32 %v1683, %v1776
          %v1796 = vmul.f32 %v1684, %v1778
          %v1797 = vmul.f32 %v1685, %v1780
          %v1798 = vmul.f32 %v1686, %v1782
          %s1799 = smul.u32 %s340, 4
          %s1800 = ssub.s32 %s315, %s1799
          %s1801 = smul.u32 %s1800, 128
          %v1802 = vstv %s1801
          %vm1803 = vcmp.lt.s32.totalorder %v327, %v1802
          %vm1804 = vcmp.lt.s32.totalorder %v328, %v1802
          %vm1805 = vcmp.lt.s32.totalorder %v329, %v1802
          %vm1806 = vcmp.lt.s32.totalorder %v330, %v1802
          %vm1807 = vmand %vm335, %vm1803
          %vm1808 = vmand %vm336, %vm1804
          %vm1809 = vmand %vm337, %vm1805
          %vm1810 = vmand %vm338, %vm1806
          %v1811 = vsel %vm1807, 1, 0
          %v1812 = vsel %vm1808, 1, 0
          %v1813 = vsel %vm1809, 1, 0
          %v1814 = vsel %vm1810, 1, 0
          %vm1815 = vcmp.eq.s32.totalorder %v1811, 1
          %vm1816 = vcmp.eq.s32.totalorder %v1812, 1
          %vm1817 = vcmp.eq.s32.totalorder %v1813, 1
          %vm1818 = vcmp.eq.s32.totalorder %v1814, 1
          %v1819 = vsel %vm1815, %v1783, 0.0
          %v1820 = vsel %vm1816, %v1784, 0.0
          %v1821 = vsel %vm1817, %v1785, 0.0
          %v1822 = vsel %vm1818, %v1786, 0.0
          %v1823 = vsel %vm1815, %v1787, 0.0
          %v1824 = vsel %vm1816, %v1788, 0.0
          %v1825 = vsel %vm1817, %v1789, 0.0
          %v1826 = vsel %vm1818, %v1790, 0.0
          %v1827 = vsel %vm1815, %v1791, 0.0
          %v1828 = vsel %vm1816, %v1792, 0.0
          %v1829 = vsel %vm1817, %v1793, 0.0
          %v1830 = vsel %vm1818, %v1794, 0.0
          %v1831 = vsel %vm1815, %v1795, 0.0
          %v1832 = vsel %vm1816, %v1796, 0.0
          %v1833 = vsel %vm1817, %v1797, 0.0
          %v1834 = vsel %vm1818, %v1798, 0.0
          %v1835 = vadd.f32 %v1819, %v1820
          %v1836 = vadd.f32 %v1835, %v1821
          %v1837 = vadd.f32 %v1836, %v1822
          %1838 = vadd.xlane.f32.xlu0 %v1837
          %v1839 = vpop.xlane.xlu0 %1838
          %v1840 = vadd.f32 %v1823, %v1824
          %v1841 = vadd.f32 %v1840, %v1825
          %v1842 = vadd.f32 %v1841, %v1826
          %1843 = vadd.xlane.f32.xlu0 %v1842
          %v1844 = vpop.xlane.xlu0 %1843
          %v1845 = vadd.f32 %v1827, %v1828
          %v1846 = vadd.f32 %v1845, %v1829
          %v1847 = vadd.f32 %v1846, %v1830
          %1848 = vadd.xlane.f32.xlu0 %v1847
          %v1849 = vpop.xlane.xlu0 %1848
          %v1850 = vadd.f32 %v1831, %v1832
          %v1851 = vadd.f32 %v1850, %v1833
          %v1852 = vadd.f32 %v1851, %v1834
          %1853 = vadd.xlane.f32.xlu0 %v1852
          %v1854 = vpop.xlane.xlu0 %1853
          %v1855 = vadd.f32 %v345, %v1839
          %v1856 = vadd.f32 %v346, %v1844
          %v1857 = vadd.f32 %v347, %v1849
          %v1858 = vadd.f32 %v348, %v1854
        $region57: #{efficientnet_forward.1} parent=47 // loop_footer
          %s342 = sadd.s32 %s340, 1
        $region58: #{efficientnet_forward.1} parent=47 // loop_footer_branch
          %339 = sbr.rel target = $region54
        $region59: #{efficientnet_forward.1} parent=47 // loop_exit
          _
        %v1859 = vld [vmem:[#allocation2] sm:$0xff]
        %v1860 = vld [vmem:[#allocation2 + $0x8] sm:$0xff]
        %v1861 = vld [vmem:[#allocation2 + $0x10] sm:$0xff]
        %v1862 = vld [vmem:[#allocation2 + $0x18] sm:$0xff]
        %v1863 = vadd.f32 %v1859, %v345
        %v1864 = vadd.f32 %v1860, %v346
        %v1865 = vadd.f32 %v1861, %v347
        %v1866 = vadd.f32 %v1862, %v348
        %vm1867 = vcmask 7168
        %1868 = vst.msk [vmem:[#allocation2] sm:$0xff] %vm1867, %v1863
        %1869 = vst.msk [vmem:[#allocation2 + $0x8] sm:$0xff] %vm1867, %v1864
        %1870 = vst.msk [vmem:[#allocation2 + $0x10] sm:$0xff] %vm1867, %v1865
        %1871 = vst.msk [vmem:[#allocation2 + $0x18] sm:$0xff] %vm1867, %v1866
        %p1872 = scmp.eq.s32.totalorder %s26, 2
        // Predicated region
        $region60: #{efficientnet_forward.1} parent=47 // pred_check
          %p1873 = pneg %p1872
        $region61: #{efficientnet_forward.1} parent=47 // pred_check_branch
          %1875 = sbr.rel (%p1873) target = $region63
        $region62: #{efficientnet_forward.1} parent=47 // pred_region
          %v1876 = vld [vmem:[#allocation2] sm:$0xff]
          %v1877 = vld [vmem:[#allocation2 + $0x8] sm:$0xff]
          %v1878 = vld [vmem:[#allocation2 + $0x10] sm:$0xff]
          %v1879 = vld [vmem:[#allocation2 + $0x18] sm:$0xff]
          %v1880 = vmul.f32 %v1876, 0.0009765625
          %v1881 = vmul.f32 %v1877, 0.0009765625
          %v1882 = vmul.f32 %v1878, 0.0009765625
          %v1883 = vmul.f32 %v1879, 0.0009765625
          %1884 = vxpose.xlu0.b32.start [1/16] %v1880, 128
          %1885 = vxpose.xlu0.b32.cont [2/16] %v1881, 128
          %1886 = vxpose.xlu0.b32.cont [3/16] %v1882, 128
          %1887 = vxpose.xlu0.b32.cont [4/16] %v1883, 128
          %1888 = vxpose.xlu0.b32.cont [5/16] 0.0, 128
          %1889 = vxpose.xlu0.b32.cont [6/16] 0.0, 128
          %1890 = vxpose.xlu0.b32.cont [7/16] 0.0, 128
          %1891 = vxpose.xlu0.b32.cont [8/16] 0.0, 128
          %1892 = vxpose.xlu0.b32.cont [9/16] 0.0, 128
          %1893 = vxpose.xlu0.b32.cont [10/16] 0.0, 128
          %1894 = vxpose.xlu0.b32.cont [11/16] 0.0, 128
          %1895 = vxpose.xlu0.b32.cont [12/16] 0.0, 128
          %1896 = vxpose.xlu0.b32.cont [13/16] 0.0, 128
          %1897 = vxpose.xlu0.b32.cont [14/16] 0.0, 128
          %1898 = vxpose.xlu0.b32.cont [15/16] 0.0, 128
          %1899 = vxpose.xlu0.b32.end [16/16] 0.0, 128
          %v1900 = vpop.trf.xlu0
          %v1901 = vpop.trf.xlu0
          %v1902 = vpop.trf.xlu0
          %v1903 = vpop.trf.xlu0
          %v1904 = vpop.trf.xlu0
          %v1905 = vpop.trf.xlu0
          %v1906 = vpop.trf.xlu0
          %v1907 = vpop.trf.xlu0
          %v1908 = vpop.trf.xlu0
          %v1909 = vpop.trf.xlu0
          %v1910 = vpop.trf.xlu0
          %v1911 = vpop.trf.xlu0
          %v1912 = vpop.trf.xlu0
          %v1913 = vpop.trf.xlu0
          %v1914 = vpop.trf.xlu0
          %v1915 = vpop.trf.xlu0
          %v1916 = vpack.c.bf16 %v1900, %v1900
          %v1917 = vld [vmem:[%s3] sm:$0xff]
          %v1918 = vld [vmem:[%s3 + $0x8] sm:$0xff]
          %v1919 = vld [vmem:[%s3 + $0x10] sm:$0xff]
          %v1920 = vld [vmem:[%s3 + $0x18] sm:$0xff]
          %v1921 = vld [vmem:[%s3 + $0x20] sm:$0xff]
          %v1922 = vld [vmem:[%s3 + $0x28] sm:$0xff]
          %v1923 = vld [vmem:[%s3 + $0x30] sm:$0xff]
          %v1924 = vld [vmem:[%s3 + $0x38] sm:$0xff]
          %v1925 = vld [vmem:[%s3 + $0x40] sm:$0xff]
          %v1926 = vld [vmem:[%s3 + $0x48] sm:$0xff]
          %v1927 = vld [vmem:[%s3 + $0x50] sm:$0xff]
          %v1928 = vld [vmem:[%s3 + $0x58] sm:$0xff]
          %v1929 = vld [vmem:[%s3 + $0x60] sm:$0xff]
          %v1930 = vld [vmem:[%s3 + $0x68] sm:$0xff]
          %v1931 = vld [vmem:[%s3 + $0x70] sm:$0xff]
          %v1932 = vld [vmem:[%s3 + $0x78] sm:$0xff]
          %v1933 = vld [vmem:[%s4] sm:$0xff]
          %v1950 = vunpack.c.l.b16 %v1917
          %v1951 = vunpack.c.h.b16 %v1917
          %v1952 = vunpack.c.l.b16 %v1918
          %v1953 = vunpack.c.h.b16 %v1918
          %v1954 = vunpack.c.l.b16 %v1919
          %v1955 = vunpack.c.h.b16 %v1919
          %v1956 = vunpack.c.l.b16 %v1920
          %v1957 = vunpack.c.h.b16 %v1920
          %v1958 = vunpack.c.l.b16 %v1921
          %v1959 = vunpack.c.h.b16 %v1921
          %v1960 = vunpack.c.l.b16 %v1922
          %v1961 = vunpack.c.h.b16 %v1922
          %v1962 = vunpack.c.l.b16 %v1923
          %v1963 = vunpack.c.h.b16 %v1923
          %v1964 = vunpack.c.l.b16 %v1924
          %v1965 = vunpack.c.h.b16 %v1924
          %v1966 = vunpack.c.l.b16 %v1925
          %v1967 = vunpack.c.h.b16 %v1925
          %v1968 = vunpack.c.l.b16 %v1926
          %v1969 = vunpack.c.h.b16 %v1926
          %v1970 = vunpack.c.l.b16 %v1927
          %v1971 = vunpack.c.h.b16 %v1927
          %v1972 = vunpack.c.l.b16 %v1928
          %v1973 = vunpack.c.h.b16 %v1928
          %v1974 = vunpack.c.l.b16 %v1929
          %v1975 = vunpack.c.h.b16 %v1929
          %v1976 = vunpack.c.l.b16 %v1930
          %v1977 = vunpack.c.h.b16 %v1930
          %v1978 = vunpack.c.l.b16 %v1931
          %v1979 = vunpack.c.h.b16 %v1931
          %v1980 = vunpack.c.l.b16 %v1932
          %v1981 = vunpack.c.h.b16 %v1932
          %v1982 = vpack.c.b16 %v1958, %v1950
          %v1983 = vpack.c.b16 %v1959, %v1951
          %v1984 = vpack.c.b16 %v1960, %v1952
          %v1985 = vpack.c.b16 %v1961, %v1953
          %v1986 = vpack.c.b16 %v1962, %v1954
          %v1987 = vpack.c.b16 %v1963, %v1955
          %v1988 = vpack.c.b16 %v1964, %v1956
          %v1989 = vpack.c.b16 %v1965, %v1957
          %v1990 = vpack.c.b16 %v1974, %v1966
          %v1991 = vpack.c.b16 %v1975, %v1967
          %v1992 = vpack.c.b16 %v1976, %v1968
          %v1993 = vpack.c.b16 %v1977, %v1969
          %v1994 = vpack.c.b16 %v1978, %v1970
          %v1995 = vpack.c.b16 %v1979, %v1971
          %v1996 = vpack.c.b16 %v1980, %v1972
          %v1997 = vpack.c.b16 %v1981, %v1973
          %v2015 = vlaneseq
          %v2016 = vshrl.u32 %v2015, 7
          %v2017 = vsub.s32 0, %v2016
          %v2018 = vrot.slane %v1933, %v2017
          %v2019 = vlaneseq
          %v2020 = vshrl.u32 %v2019, 7
          %v2021 = vsub.s32 1, %v2020
          %v2022 = vrot.slane %v1933, %v2021
          %v2023 = vlaneseq
          %v2024 = vshrl.u32 %v2023, 7
          %v2025 = vsub.s32 2, %v2024
          %v2026 = vrot.slane %v1933, %v2025
          %v2027 = vlaneseq
          %v2028 = vshrl.u32 %v2027, 7
          %v2029 = vsub.s32 3, %v2028
          %v2030 = vrot.slane %v1933, %v2029
          %v2031 = vlaneseq
          %v2032 = vshrl.u32 %v2031, 7
          %v2033 = vsub.s32 4, %v2032
          %v2034 = vrot.slane %v1933, %v2033
          %v2035 = vlaneseq
          %v2036 = vshrl.u32 %v2035, 7
          %v2037 = vsub.s32 5, %v2036
          %v2038 = vrot.slane %v1933, %v2037
          %v2039 = vlaneseq
          %v2040 = vshrl.u32 %v2039, 7
          %v2041 = vsub.s32 6, %v2040
          %v2042 = vrot.slane %v1933, %v2041
          %v2043 = vlaneseq
          %v2044 = vshrl.u32 %v2043, 7
          %v2045 = vsub.s32 7, %v2044
          %v2046 = vrot.slane %v1933, %v2045
          %vm2055 = vcmask 261120
          %v2057 = vsel %vm2055, %v1916, 0
          %2059 = vmatprep.subr.bf16.mxu0 %v1983
          %2060 = vmatpush1.bf16.msra.mxu0 %v1982
          %2061 = vmatprep.subr.bf16.mxu0 %v1991
          %2062 = vmatpush1.bf16.msra.mxu0 %v1990
          %2063 = vmatprep.subr.bf16.mxu0 0
          %2064 = vmatpush1.bf16.msra.mxu0 0
          %2065 = vmatprep.subr.bf16.mxu0 0
          %2066 = vmatpush1.bf16.msra.mxu0 0
          %2067 = vmatprep.subr.bf16.mxu0 0
          %2068 = vmatpush1.bf16.msra.mxu0 0
          %2069 = vmatprep.subr.bf16.mxu0 0
          %2070 = vmatpush1.bf16.msra.mxu0 0
          %2071 = vmatprep.subr.bf16.mxu0 0
          %2072 = vmatpush1.bf16.msra.mxu0 0
          %2073 = vmatprep.subr.bf16.mxu0 0
          %2074 = vmatpush1.bf16.msra.mxu0 0
          %2075 = vmatprep.subr.bf16.mxu0 0
          %2076 = vmatpush1.bf16.msra.mxu0 0
          %2077 = vmatprep.subr.bf16.mxu0 0
          %2078 = vmatpush1.bf16.msra.mxu0 0
          %2079 = vmatprep.subr.bf16.mxu0 0
          %2080 = vmatpush1.bf16.msra.mxu0 0
          %2081 = vmatprep.subr.bf16.mxu0 0
          %2082 = vmatpush1.bf16.msra.mxu0 0
          %2083 = vmatprep.subr.bf16.mxu0 0
          %2084 = vmatpush1.bf16.msra.mxu0 0
          %2085 = vmatprep.subr.bf16.mxu0 0
          %2086 = vmatpush1.bf16.msra.mxu0 0
          %2087 = vmatprep.subr.bf16.mxu0 0
          %2088 = vmatpush1.bf16.msra.mxu0 0
          %2089 = vmatprep.subr.bf16.mxu0 0
          %2090 = vmatpush1.bf16.msra.mxu0 0
          %2091 = vmatprep.mubr.bf16.mxu0 0
          %2092 = vmatmul.mubr.bf16.gmra.mrb[0].mxu0 %v2057
          %v2093 = vpop.f32.mrb[0].mxu0
          %v2094 = vadd.f32 %v2018, %v2093
          %v2095 = vpop.f32.mrb[0].mxu0
          %v2096 = vadd.f32 %v2022, %v2095
          %v2097 = vpop.f32.mrb[0].mxu0
          %v2098 = vpop.f32.mrb[0].mxu0
          %2099 = vdwg.mxu0
          %2100 = vmatprep.subr.bf16.mxu0 %v1985
          %2101 = vmatpush1.bf16.msra.mxu0 %v1984
          %2102 = vmatprep.subr.bf16.mxu0 %v1993
          %2103 = vmatpush1.bf16.msra.mxu0 %v1992
          %2104 = vmatprep.subr.bf16.mxu0 0
          %2105 = vmatpush1.bf16.msra.mxu0 0
          %2106 = vmatprep.subr.bf16.mxu0 0
          %2107 = vmatpush1.bf16.msra.mxu0 0
          %2108 = vmatprep.subr.bf16.mxu0 0
          %2109 = vmatpush1.bf16.msra.mxu0 0
          %2110 = vmatprep.subr.bf16.mxu0 0
          %2111 = vmatpush1.bf16.msra.mxu0 0
          %2112 = vmatprep.subr.bf16.mxu0 0
          %2113 = vmatpush1.bf16.msra.mxu0 0
          %2114 = vmatprep.subr.bf16.mxu0 0
          %2115 = vmatpush1.bf16.msra.mxu0 0
          %2116 = vmatprep.subr.bf16.mxu0 0
          %2117 = vmatpush1.bf16.msra.mxu0 0
          %2118 = vmatprep.subr.bf16.mxu0 0
          %2119 = vmatpush1.bf16.msra.mxu0 0
          %2120 = vmatprep.subr.bf16.mxu0 0
          %2121 = vmatpush1.bf16.msra.mxu0 0
          %2122 = vmatprep.subr.bf16.mxu0 0
          %2123 = vmatpush1.bf16.msra.mxu0 0
          %2124 = vmatprep.subr.bf16.mxu0 0
          %2125 = vmatpush1.bf16.msra.mxu0 0
          %2126 = vmatprep.subr.bf16.mxu0 0
          %2127 = vmatpush1.bf16.msra.mxu0 0
          %2128 = vmatprep.subr.bf16.mxu0 0
          %2129 = vmatpush1.bf16.msra.mxu0 0
          %2130 = vmatprep.subr.bf16.mxu0 0
          %2131 = vmatpush1.bf16.msra.mxu0 0
          %2132 = vmatprep.mubr.bf16.mxu0 0
          %2133 = vmatmul.mubr.bf16.gmra.mrb[0].mxu0 %v2057
          %v2134 = vpop.f32.mrb[0].mxu0
          %v2135 = vadd.f32 %v2026, %v2134
          %v2136 = vpop.f32.mrb[0].mxu0
          %v2137 = vadd.f32 %v2030, %v2136
          %v2138 = vpop.f32.mrb[0].mxu0
          %v2139 = vpop.f32.mrb[0].mxu0
          %2140 = vdwg.mxu0
          %2141 = vmatprep.subr.bf16.mxu0 %v1987
          %2142 = vmatpush1.bf16.msra.mxu0 %v1986
          %2143 = vmatprep.subr.bf16.mxu0 %v1995
          %2144 = vmatpush1.bf16.msra.mxu0 %v1994
          %2145 = vmatprep.subr.bf16.mxu0 0
          %2146 = vmatpush1.bf16.msra.mxu0 0
          %2147 = vmatprep.subr.bf16.mxu0 0
          %2148 = vmatpush1.bf16.msra.mxu0 0
          %2149 = vmatprep.subr.bf16.mxu0 0
          %2150 = vmatpush1.bf16.msra.mxu0 0
          %2151 = vmatprep.subr.bf16.mxu0 0
          %2152 = vmatpush1.bf16.msra.mxu0 0
          %2153 = vmatprep.subr.bf16.mxu0 0
          %2154 = vmatpush1.bf16.msra.mxu0 0
          %2155 = vmatprep.subr.bf16.mxu0 0
          %2156 = vmatpush1.bf16.msra.mxu0 0
          %2157 = vmatprep.subr.bf16.mxu0 0
          %2158 = vmatpush1.bf16.msra.mxu0 0
          %2159 = vmatprep.subr.bf16.mxu0 0
          %2160 = vmatpush1.bf16.msra.mxu0 0
          %2161 = vmatprep.subr.bf16.mxu0 0
          %2162 = vmatpush1.bf16.msra.mxu0 0
          %2163 = vmatprep.subr.bf16.mxu0 0
          %2164 = vmatpush1.bf16.msra.mxu0 0
          %2165 = vmatprep.subr.bf16.mxu0 0
          %2166 = vmatpush1.bf16.msra.mxu0 0
          %2167 = vmatprep.subr.bf16.mxu0 0
          %2168 = vmatpush1.bf16.msra.mxu0 0
          %2169 = vmatprep.subr.bf16.mxu0 0
          %2170 = vmatpush1.bf16.msra.mxu0 0
          %2171 = vmatprep.subr.bf16.mxu0 0
          %2172 = vmatpush1.bf16.msra.mxu0 0
          %2173 = vmatprep.mubr.bf16.mxu0 0
          %2174 = vmatmul.mubr.bf16.gmra.mrb[0].mxu0 %v2057
          %v2175 = vpop.f32.mrb[0].mxu0
          %v2176 = vadd.f32 %v2034, %v2175
          %v2177 = vpop.f32.mrb[0].mxu0
          %v2178 = vadd.f32 %v2038, %v2177
          %v2179 = vpop.f32.mrb[0].mxu0
          %v2180 = vpop.f32.mrb[0].mxu0
          %2181 = vdwg.mxu0
          %2182 = vmatprep.subr.bf16.mxu0 %v1989
          %2183 = vmatpush1.bf16.msra.mxu0 %v1988
          %2184 = vmatprep.subr.bf16.mxu0 %v1997
          %2185 = vmatpush1.bf16.msra.mxu0 %v1996
          %2186 = vmatprep.subr.bf16.mxu0 0
          %2187 = vmatpush1.bf16.msra.mxu0 0
          %2188 = vmatprep.subr.bf16.mxu0 0
          %2189 = vmatpush1.bf16.msra.mxu0 0
          %2190 = vmatprep.subr.bf16.mxu0 0
          %2191 = vmatpush1.bf16.msra.mxu0 0
          %2192 = vmatprep.subr.bf16.mxu0 0
          %2193 = vmatpush1.bf16.msra.mxu0 0
          %2194 = vmatprep.subr.bf16.mxu0 0
          %2195 = vmatpush1.bf16.msra.mxu0 0
          %2196 = vmatprep.subr.bf16.mxu0 0
          %2197 = vmatpush1.bf16.msra.mxu0 0
          %2198 = vmatprep.subr.bf16.mxu0 0
          %2199 = vmatpush1.bf16.msra.mxu0 0
          %2200 = vmatprep.subr.bf16.mxu0 0
          %2201 = vmatpush1.bf16.msra.mxu0 0
          %2202 = vmatprep.subr.bf16.mxu0 0
          %2203 = vmatpush1.bf16.msra.mxu0 0
          %2204 = vmatprep.subr.bf16.mxu0 0
          %2205 = vmatpush1.bf16.msra.mxu0 0
          %2206 = vmatprep.subr.bf16.mxu0 0
          %2207 = vmatpush1.bf16.msra.mxu0 0
          %2208 = vmatprep.subr.bf16.mxu0 0
          %2209 = vmatpush1.bf16.msra.mxu0 0
          %2210 = vmatprep.subr.bf16.mxu0 0
          %2211 = vmatpush1.bf16.msra.mxu0 0
          %2212 = vmatprep.subr.bf16.mxu0 0
          %2213 = vmatpush1.bf16.msra.mxu0 0
          %2214 = vmatprep.mubr.bf16.mxu0 0
          %2215 = vmatmul.mubr.bf16.gmra.mrb[0].mxu0 %v2057
          %v2216 = vpop.f32.mrb[0].mxu0
          %v2217 = vadd.f32 %v2042, %v2216
          %v2218 = vpop.f32.mrb[0].mxu0
          %v2219 = vadd.f32 %v2046, %v2218
          %v2220 = vpop.f32.mrb[0].mxu0
          %v2221 = vpop.f32.mrb[0].mxu0
          %2222 = vdwg.mxu0
          %v2223 = vmax.f32 %v2094, 0.0
          %v2224 = vmax.f32 %v2096, 0.0
          %v2225 = vmax.f32 %v2135, 0.0
          %v2226 = vmax.f32 %v2137, 0.0
          %v2227 = vmax.f32 %v2176, 0.0
          %v2228 = vmax.f32 %v2178, 0.0
          %v2229 = vmax.f32 %v2217, 0.0
          %v2230 = vmax.f32 %v2219, 0.0
          %v2231 = vpack.c.bf16 %v2223, %v2223
          %v2232 = vpack.c.bf16 %v2224, %v2224
          %v2233 = vpack.c.bf16 %v2225, %v2225
          %v2234 = vpack.c.bf16 %v2226, %v2226
          %v2235 = vpack.c.bf16 %v2227, %v2227
          %v2236 = vpack.c.bf16 %v2228, %v2228
          %v2237 = vpack.c.bf16 %v2229, %v2229
          %v2238 = vpack.c.bf16 %v2230, %v2230
          %v2239 = vld [vmem:[%s5] sm:$0xf]
          %v2240 = vld [vmem:[%s5 + $0x4] sm:$0xf]
          %v2241 = vld [vmem:[%s5 + $0x8] sm:$0xf]
          %v2242 = vld [vmem:[%s5 + $0xc] sm:$0xf]
          %v2243 = vld [vmem:[%s5 + $0x10] sm:$0xf]
          %v2244 = vld [vmem:[%s5 + $0x14] sm:$0xf]
          %v2245 = vld [vmem:[%s5 + $0x18] sm:$0xf]
          %v2246 = vld [vmem:[%s5 + $0x1c] sm:$0xf]
          %v2247 = vld [vmem:[%s5 + $0x20] sm:$0xf]
          %v2248 = vld [vmem:[%s5 + $0x24] sm:$0xf]
          %v2249 = vld [vmem:[%s5 + $0x28] sm:$0xf]
          %v2250 = vld [vmem:[%s5 + $0x2c] sm:$0xf]
          %v2251 = vld [vmem:[%s5 + $0x30] sm:$0xf]
          %v2252 = vld [vmem:[%s5 + $0x34] sm:$0xf]
          %v2253 = vld [vmem:[%s5 + $0x38] sm:$0xf]
          %v2254 = vld [vmem:[%s5 + $0x3c] sm:$0xf]
          %v2255 = vld [vmem:[%s5 + $0x40] sm:$0xf]
          %v2256 = vld [vmem:[%s5 + $0x44] sm:$0xf]
          %v2257 = vld [vmem:[%s5 + $0x48] sm:$0xf]
          %v2258 = vld [vmem:[%s5 + $0x4c] sm:$0xf]
          %v2259 = vld [vmem:[%s5 + $0x50] sm:$0xf]
          %v2260 = vld [vmem:[%s5 + $0x54] sm:$0xf]
          %v2261 = vld [vmem:[%s5 + $0x58] sm:$0xf]
          %v2262 = vld [vmem:[%s5 + $0x5c] sm:$0xf]
          %v2263 = vld [vmem:[%s5 + $0x60] sm:$0xf]
          %v2264 = vld [vmem:[%s5 + $0x64] sm:$0xf]
          %v2265 = vld [vmem:[%s5 + $0x68] sm:$0xf]
          %v2266 = vld [vmem:[%s5 + $0x6c] sm:$0xf]
          %v2267 = vld [vmem:[%s5 + $0x70] sm:$0xf]
          %v2268 = vld [vmem:[%s5 + $0x74] sm:$0xf]
          %v2269 = vld [vmem:[%s5 + $0x78] sm:$0xf]
          %v2270 = vld [vmem:[%s5 + $0x7c] sm:$0xf]
          %v2271 = vld [vmem:[%s5 + $0x80] sm:$0xf]
          %v2272 = vld [vmem:[%s5 + $0x84] sm:$0xf]
          %v2273 = vld [vmem:[%s5 + $0x88] sm:$0xf]
          %v2274 = vld [vmem:[%s5 + $0x8c] sm:$0xf]
          %v2275 = vld [vmem:[%s5 + $0x90] sm:$0xf]
          %v2276 = vld [vmem:[%s5 + $0x94] sm:$0xf]
          %v2277 = vld [vmem:[%s5 + $0x98] sm:$0xf]
          %v2278 = vld [vmem:[%s5 + $0x9c] sm:$0xf]
          %v2279 = vld [vmem:[%s5 + $0xa0] sm:$0xf]
          %v2280 = vld [vmem:[%s5 + $0xa4] sm:$0xf]
          %v2281 = vld [vmem:[%s5 + $0xa8] sm:$0xf]
          %v2282 = vld [vmem:[%s5 + $0xac] sm:$0xf]
          %v2283 = vld [vmem:[%s5 + $0xb0] sm:$0xf]
          %v2284 = vld [vmem:[%s5 + $0xb4] sm:$0xf]
          %v2285 = vld [vmem:[%s5 + $0xb8] sm:$0xf]
          %v2286 = vld [vmem:[%s5 + $0xbc] sm:$0xf]
          %v2287 = vld [vmem:[%s5 + $0xc0] sm:$0xf]
          %v2288 = vld [vmem:[%s5 + $0xc4] sm:$0xf]
          %v2289 = vld [vmem:[%s5 + $0xc8] sm:$0xf]
          %v2290 = vld [vmem:[%s5 + $0xcc] sm:$0xf]
          %v2291 = vld [vmem:[%s5 + $0xd0] sm:$0xf]
          %v2292 = vld [vmem:[%s5 + $0xd4] sm:$0xf]
          %v2293 = vld [vmem:[%s5 + $0xd8] sm:$0xf]
          %v2294 = vld [vmem:[%s5 + $0xdc] sm:$0xf]
          %v2295 = vld [vmem:[%s5 + $0xe0] sm:$0xf]
          %v2296 = vld [vmem:[%s5 + $0xe4] sm:$0xf]
          %v2297 = vld [vmem:[%s5 + $0xe8] sm:$0xf]
          %v2298 = vld [vmem:[%s5 + $0xec] sm:$0xf]
          %v2299 = vld [vmem:[%s5 + $0xf0] sm:$0xf]
          %v2300 = vld [vmem:[%s5 + $0xf4] sm:$0xf]
          %v2301 = vld [vmem:[%s5 + $0xf8] sm:$0xf]
          %v2302 = vld [vmem:[%s5 + $0xfc] sm:$0xf]
          %v2303 = vld [vmem:[%s5 + $0x100] sm:$0xf]
          %v2304 = vld [vmem:[%s5 + $0x104] sm:$0xf]
          %v2305 = vld [vmem:[%s5 + $0x108] sm:$0xf]
          %v2306 = vld [vmem:[%s5 + $0x10c] sm:$0xf]
          %v2307 = vld [vmem:[%s5 + $0x110] sm:$0xf]
          %v2308 = vld [vmem:[%s5 + $0x114] sm:$0xf]
          %v2309 = vld [vmem:[%s5 + $0x118] sm:$0xf]
          %v2310 = vld [vmem:[%s5 + $0x11c] sm:$0xf]
          %v2311 = vld [vmem:[%s5 + $0x120] sm:$0xf]
          %v2312 = vld [vmem:[%s5 + $0x124] sm:$0xf]
          %v2313 = vld [vmem:[%s5 + $0x128] sm:$0xf]
          %v2314 = vld [vmem:[%s5 + $0x12c] sm:$0xf]
          %v2315 = vld [vmem:[%s5 + $0x130] sm:$0xf]
          %v2316 = vld [vmem:[%s5 + $0x134] sm:$0xf]
          %v2317 = vld [vmem:[%s5 + $0x138] sm:$0xf]
          %v2318 = vld [vmem:[%s5 + $0x13c] sm:$0xf]
          %v2319 = vld [vmem:[%s5 + $0x140] sm:$0xf]
          %v2320 = vld [vmem:[%s5 + $0x144] sm:$0xf]
          %v2321 = vld [vmem:[%s5 + $0x148] sm:$0xf]
          %v2322 = vld [vmem:[%s5 + $0x14c] sm:$0xf]
          %v2323 = vld [vmem:[%s5 + $0x150] sm:$0xf]
          %v2324 = vld [vmem:[%s5 + $0x154] sm:$0xf]
          %v2325 = vld [vmem:[%s5 + $0x158] sm:$0xf]
          %v2326 = vld [vmem:[%s5 + $0x15c] sm:$0xf]
          %v2327 = vld [vmem:[%s5 + $0x160] sm:$0xf]
          %v2328 = vld [vmem:[%s5 + $0x164] sm:$0xf]
          %v2329 = vld [vmem:[%s5 + $0x168] sm:$0xf]
          %v2330 = vld [vmem:[%s5 + $0x16c] sm:$0xf]
          %v2331 = vld [vmem:[%s5 + $0x170] sm:$0xf]
          %v2332 = vld [vmem:[%s5 + $0x174] sm:$0xf]
          %v2333 = vld [vmem:[%s5 + $0x178] sm:$0xf]
          %v2334 = vld [vmem:[%s5 + $0x17c] sm:$0xf]
          %v2335 = vld [vmem:[%s5 + $0x180] sm:$0xf]
          %v2336 = vld [vmem:[%s5 + $0x184] sm:$0xf]
          %v2337 = vld [vmem:[%s5 + $0x188] sm:$0xf]
          %v2338 = vld [vmem:[%s5 + $0x18c] sm:$0xf]
          %v2339 = vld [vmem:[%s5 + $0x190] sm:$0xf]
          %v2340 = vld [vmem:[%s5 + $0x194] sm:$0xf]
          %v2341 = vld [vmem:[%s5 + $0x198] sm:$0xf]
          %v2342 = vld [vmem:[%s5 + $0x19c] sm:$0xf]
          %v2343 = vld [vmem:[%s5 + $0x1a0] sm:$0xf]
          %v2344 = vld [vmem:[%s5 + $0x1a4] sm:$0xf]
          %v2345 = vld [vmem:[%s5 + $0x1a8] sm:$0xf]
          %v2346 = vld [vmem:[%s5 + $0x1ac] sm:$0xf]
          %v2347 = vld [vmem:[%s5 + $0x1b0] sm:$0xf]
          %v2348 = vld [vmem:[%s5 + $0x1b4] sm:$0xf]
          %v2349 = vld [vmem:[%s5 + $0x1b8] sm:$0xf]
          %v2350 = vld [vmem:[%s5 + $0x1bc] sm:$0xf]
          %v2351 = vld [vmem:[%s5 + $0x1c0] sm:$0xf]
          %v2352 = vld [vmem:[%s5 + $0x1c4] sm:$0xf]
          %v2353 = vld [vmem:[%s5 + $0x1c8] sm:$0xf]
          %v2354 = vld [vmem:[%s5 + $0x1cc] sm:$0xf]
          %v2355 = vld [vmem:[%s5 + $0x1d0] sm:$0xf]
          %v2356 = vld [vmem:[%s5 + $0x1d4] sm:$0xf]
          %v2357 = vld [vmem:[%s5 + $0x1d8] sm:$0xf]
          %v2358 = vld [vmem:[%s5 + $0x1dc] sm:$0xf]
          %v2359 = vld [vmem:[%s5 + $0x1e0] sm:$0xf]
          %v2360 = vld [vmem:[%s5 + $0x1e4] sm:$0xf]
          %v2361 = vld [vmem:[%s5 + $0x1e8] sm:$0xf]
          %v2362 = vld [vmem:[%s5 + $0x1ec] sm:$0xf]
          %v2363 = vld [vmem:[%s5 + $0x1f0] sm:$0xf]
          %v2364 = vld [vmem:[%s5 + $0x1f4] sm:$0xf]
          %v2365 = vld [vmem:[%s5 + $0x1f8] sm:$0xf]
          %v2366 = vld [vmem:[%s5 + $0x1fc] sm:$0xf]
          %v2367 = vld [vmem:[%s6] sm:$0x1]
          %v2496 = vunpack.c.l.b16 %v2239
          %v2497 = vunpack.c.l.b16 %v2240
          %v2498 = vunpack.c.l.b16 %v2241
          %v2499 = vunpack.c.l.b16 %v2242
          %v2500 = vunpack.c.l.b16 %v2243
          %v2501 = vunpack.c.l.b16 %v2244
          %v2502 = vunpack.c.l.b16 %v2245
          %v2503 = vunpack.c.l.b16 %v2246
          %v2504 = vunpack.c.l.b16 %v2247
          %v2505 = vunpack.c.l.b16 %v2248
          %v2506 = vunpack.c.l.b16 %v2249
          %v2507 = vunpack.c.l.b16 %v2250
          %v2508 = vunpack.c.l.b16 %v2251
          %v2509 = vunpack.c.l.b16 %v2252
          %v2510 = vunpack.c.l.b16 %v2253
          %v2511 = vunpack.c.l.b16 %v2254
          %v2512 = vunpack.c.l.b16 %v2255
          %v2513 = vunpack.c.l.b16 %v2256
          %v2514 = vunpack.c.l.b16 %v2257
          %v2515 = vunpack.c.l.b16 %v2258
          %v2516 = vunpack.c.l.b16 %v2259
          %v2517 = vunpack.c.l.b16 %v2260
          %v2518 = vunpack.c.l.b16 %v2261
          %v2519 = vunpack.c.l.b16 %v2262
          %v2520 = vunpack.c.l.b16 %v2263
          %v2521 = vunpack.c.l.b16 %v2264
          %v2522 = vunpack.c.l.b16 %v2265
          %v2523 = vunpack.c.l.b16 %v2266
          %v2524 = vunpack.c.l.b16 %v2267
          %v2525 = vunpack.c.l.b16 %v2268
          %v2526 = vunpack.c.l.b16 %v2269
          %v2527 = vunpack.c.l.b16 %v2270
          %v2528 = vunpack.c.l.b16 %v2271
          %v2529 = vunpack.c.l.b16 %v2272
          %v2530 = vunpack.c.l.b16 %v2273
          %v2531 = vunpack.c.l.b16 %v2274
          %v2532 = vunpack.c.l.b16 %v2275
          %v2533 = vunpack.c.l.b16 %v2276
          %v2534 = vunpack.c.l.b16 %v2277
          %v2535 = vunpack.c.l.b16 %v2278
          %v2536 = vunpack.c.l.b16 %v2279
          %v2537 = vunpack.c.l.b16 %v2280
          %v2538 = vunpack.c.l.b16 %v2281
          %v2539 = vunpack.c.l.b16 %v2282
          %v2540 = vunpack.c.l.b16 %v2283
          %v2541 = vunpack.c.l.b16 %v2284
          %v2542 = vunpack.c.l.b16 %v2285
          %v2543 = vunpack.c.l.b16 %v2286
          %v2544 = vunpack.c.l.b16 %v2287
          %v2545 = vunpack.c.l.b16 %v2288
          %v2546 = vunpack.c.l.b16 %v2289
          %v2547 = vunpack.c.l.b16 %v2290
          %v2548 = vunpack.c.l.b16 %v2291
          %v2549 = vunpack.c.l.b16 %v2292
          %v2550 = vunpack.c.l.b16 %v2293
          %v2551 = vunpack.c.l.b16 %v2294
          %v2552 = vunpack.c.l.b16 %v2295
          %v2553 = vunpack.c.l.b16 %v2296
          %v2554 = vunpack.c.l.b16 %v2297
          %v2555 = vunpack.c.l.b16 %v2298
          %v2556 = vunpack.c.l.b16 %v2299
          %v2557 = vunpack.c.l.b16 %v2300
          %v2558 = vunpack.c.l.b16 %v2301
          %v2559 = vunpack.c.l.b16 %v2302
          %v2560 = vunpack.c.l.b16 %v2303
          %v2561 = vunpack.c.l.b16 %v2304
          %v2562 = vunpack.c.l.b16 %v2305
          %v2563 = vunpack.c.l.b16 %v2306
          %v2564 = vunpack.c.l.b16 %v2307
          %v2565 = vunpack.c.l.b16 %v2308
          %v2566 = vunpack.c.l.b16 %v2309
          %v2567 = vunpack.c.l.b16 %v2310
          %v2568 = vunpack.c.l.b16 %v2311
          %v2569 = vunpack.c.l.b16 %v2312
          %v2570 = vunpack.c.l.b16 %v2313
          %v2571 = vunpack.c.l.b16 %v2314
          %v2572 = vunpack.c.l.b16 %v2315
          %v2573 = vunpack.c.l.b16 %v2316
          %v2574 = vunpack.c.l.b16 %v2317
          %v2575 = vunpack.c.l.b16 %v2318
          %v2576 = vunpack.c.l.b16 %v2319
          %v2577 = vunpack.c.l.b16 %v2320
          %v2578 = vunpack.c.l.b16 %v2321
          %v2579 = vunpack.c.l.b16 %v2322
          %v2580 = vunpack.c.l.b16 %v2323
          %v2581 = vunpack.c.l.b16 %v2324
          %v2582 = vunpack.c.l.b16 %v2325
          %v2583 = vunpack.c.l.b16 %v2326
          %v2584 = vunpack.c.l.b16 %v2327
          %v2585 = vunpack.c.l.b16 %v2328
          %v2586 = vunpack.c.l.b16 %v2329
          %v2587 = vunpack.c.l.b16 %v2330
          %v2588 = vunpack.c.l.b16 %v2331
          %v2589 = vunpack.c.l.b16 %v2332
          %v2590 = vunpack.c.l.b16 %v2333
          %v2591 = vunpack.c.l.b16 %v2334
          %v2592 = vunpack.c.l.b16 %v2335
          %v2593 = vunpack.c.l.b16 %v2336
          %v2594 = vunpack.c.l.b16 %v2337
          %v2595 = vunpack.c.l.b16 %v2338
          %v2596 = vunpack.c.l.b16 %v2339
          %v2597 = vunpack.c.l.b16 %v2340
          %v2598 = vunpack.c.l.b16 %v2341
          %v2599 = vunpack.c.l.b16 %v2342
          %v2600 = vunpack.c.l.b16 %v2343
          %v2601 = vunpack.c.l.b16 %v2344
          %v2602 = vunpack.c.l.b16 %v2345
          %v2603 = vunpack.c.l.b16 %v2346
          %v2604 = vunpack.c.l.b16 %v2347
          %v2605 = vunpack.c.l.b16 %v2348
          %v2606 = vunpack.c.l.b16 %v2349
          %v2607 = vunpack.c.l.b16 %v2350
          %v2608 = vunpack.c.l.b16 %v2351
          %v2609 = vunpack.c.l.b16 %v2352
          %v2610 = vunpack.c.l.b16 %v2353
          %v2611 = vunpack.c.l.b16 %v2354
          %v2612 = vunpack.c.l.b16 %v2355
          %v2613 = vunpack.c.l.b16 %v2356
          %v2614 = vunpack.c.l.b16 %v2357
          %v2615 = vunpack.c.l.b16 %v2358
          %v2616 = vunpack.c.l.b16 %v2359
          %v2617 = vunpack.c.l.b16 %v2360
          %v2618 = vunpack.c.l.b16 %v2361
          %v2619 = vunpack.c.l.b16 %v2362
          %v2620 = vunpack.c.l.b16 %v2363
          %v2621 = vunpack.c.l.b16 %v2364
          %v2622 = vunpack.c.l.b16 %v2365
          %v2623 = vunpack.c.l.b16 %v2366
          %v2624 = vpack.c.b16 %v2497, %v2496
          %v2625 = vpack.c.b16 %v2499, %v2498
          %v2626 = vpack.c.b16 %v2501, %v2500
          %v2627 = vpack.c.b16 %v2503, %v2502
          %v2628 = vpack.c.b16 %v2505, %v2504
          %v2629 = vpack.c.b16 %v2507, %v2506
          %v2630 = vpack.c.b16 %v2509, %v2508
          %v2631 = vpack.c.b16 %v2511, %v2510
          %v2632 = vpack.c.b16 %v2513, %v2512
          %v2633 = vpack.c.b16 %v2515, %v2514
          %v2634 = vpack.c.b16 %v2517, %v2516
          %v2635 = vpack.c.b16 %v2519, %v2518
          %v2636 = vpack.c.b16 %v2521, %v2520
          %v2637 = vpack.c.b16 %v2523, %v2522
          %v2638 = vpack.c.b16 %v2525, %v2524
          %v2639 = vpack.c.b16 %v2527, %v2526
          %v2640 = vpack.c.b16 %v2529, %v2528
          %v2641 = vpack.c.b16 %v2531, %v2530
          %v2642 = vpack.c.b16 %v2533, %v2532
          %v2643 = vpack.c.b16 %v2535, %v2534
          %v2644 = vpack.c.b16 %v2537, %v2536
          %v2645 = vpack.c.b16 %v2539, %v2538
          %v2646 = vpack.c.b16 %v2541, %v2540
          %v2647 = vpack.c.b16 %v2543, %v2542
          %v2648 = vpack.c.b16 %v2545, %v2544
          %v2649 = vpack.c.b16 %v2547, %v2546
          %v2650 = vpack.c.b16 %v2549, %v2548
          %v2651 = vpack.c.b16 %v2551, %v2550
          %v2652 = vpack.c.b16 %v2553, %v2552
          %v2653 = vpack.c.b16 %v2555, %v2554
          %v2654 = vpack.c.b16 %v2557, %v2556
          %v2655 = vpack.c.b16 %v2559, %v2558
          %v2656 = vpack.c.b16 %v2561, %v2560
          %v2657 = vpack.c.b16 %v2563, %v2562
          %v2658 = vpack.c.b16 %v2565, %v2564
          %v2659 = vpack.c.b16 %v2567, %v2566
          %v2660 = vpack.c.b16 %v2569, %v2568
          %v2661 = vpack.c.b16 %v2571, %v2570
          %v2662 = vpack.c.b16 %v2573, %v2572
          %v2663 = vpack.c.b16 %v2575, %v2574
          %v2664 = vpack.c.b16 %v2577, %v2576
          %v2665 = vpack.c.b16 %v2579, %v2578
          %v2666 = vpack.c.b16 %v2581, %v2580
          %v2667 = vpack.c.b16 %v2583, %v2582
          %v2668 = vpack.c.b16 %v2585, %v2584
          %v2669 = vpack.c.b16 %v2587, %v2586
          %v2670 = vpack.c.b16 %v2589, %v2588
          %v2671 = vpack.c.b16 %v2591, %v2590
          %v2672 = vpack.c.b16 %v2593, %v2592
          %v2673 = vpack.c.b16 %v2595, %v2594
          %v2674 = vpack.c.b16 %v2597, %v2596
          %v2675 = vpack.c.b16 %v2599, %v2598
          %v2676 = vpack.c.b16 %v2601, %v2600
          %v2677 = vpack.c.b16 %v2603, %v2602
          %v2678 = vpack.c.b16 %v2605, %v2604
          %v2679 = vpack.c.b16 %v2607, %v2606
          %v2680 = vpack.c.b16 %v2609, %v2608
          %v2681 = vpack.c.b16 %v2611, %v2610
          %v2682 = vpack.c.b16 %v2613, %v2612
          %v2683 = vpack.c.b16 %v2615, %v2614
          %v2684 = vpack.c.b16 %v2617, %v2616
          %v2685 = vpack.c.b16 %v2619, %v2618
          %v2686 = vpack.c.b16 %v2621, %v2620
          %v2687 = vpack.c.b16 %v2623, %v2622
          %2752 = vmatprep.subr.bf16.mxu0 0
          %2753 = vmatpush1.bf16.msra.mxu0 %v2624
          %2754 = vmatprep.subr.bf16.mxu0 0
          %2755 = vmatpush1.bf16.msra.mxu0 %v2625
          %2756 = vmatprep.subr.bf16.mxu0 0
          %2757 = vmatpush1.bf16.msra.mxu0 %v2626
          %2758 = vmatprep.subr.bf16.mxu0 0
          %2759 = vmatpush1.bf16.msra.mxu0 %v2627
          %2760 = vmatprep.subr.bf16.mxu0 0
          %2761 = vmatpush1.bf16.msra.mxu0 %v2628
          %2762 = vmatprep.subr.bf16.mxu0 0
          %2763 = vmatpush1.bf16.msra.mxu0 %v2629
          %2764 = vmatprep.subr.bf16.mxu0 0
          %2765 = vmatpush1.bf16.msra.mxu0 %v2630
          %2766 = vmatprep.subr.bf16.mxu0 0
          %2767 = vmatpush1.bf16.msra.mxu0 %v2631
          %2768 = vmatprep.subr.bf16.mxu0 0
          %2769 = vmatpush1.bf16.msra.mxu0 %v2632
          %2770 = vmatprep.subr.bf16.mxu0 0
          %2771 = vmatpush1.bf16.msra.mxu0 %v2633
          %2772 = vmatprep.subr.bf16.mxu0 0
          %2773 = vmatpush1.bf16.msra.mxu0 %v2634
          %2774 = vmatprep.subr.bf16.mxu0 0
          %2775 = vmatpush1.bf16.msra.mxu0 %v2635
          %2776 = vmatprep.subr.bf16.mxu0 0
          %2777 = vmatpush1.bf16.msra.mxu0 %v2636
          %2778 = vmatprep.subr.bf16.mxu0 0
          %2779 = vmatpush1.bf16.msra.mxu0 %v2637
          %2780 = vmatprep.subr.bf16.mxu0 0
          %2781 = vmatpush1.bf16.msra.mxu0 %v2638
          %2782 = vmatprep.subr.bf16.mxu0 0
          %2783 = vmatpush1.bf16.msra.mxu0 %v2639
          %2784 = vmatprep.mubr.bf16.mxu0 %v2232
          %2785 = vmatmul.mubr.bf16.gmra.mrb[0].mxu0 %v2231
          %v2786 = vpop.f32.mrb[0].mxu0
          %v2787 = vadd.f32 %v2367, %v2786
          %v2788 = vpop.f32.mrb[0].mxu0
          %v2789 = vpop.f32.mrb[0].mxu0
          %v2790 = vpop.f32.mrb[0].mxu0
          %2791 = vdwg.mxu0
          %2792 = vmatprep.subr.bf16.mxu0 0
          %2793 = vmatpush1.bf16.msra.mxu0 %v2640
          %2794 = vmatprep.subr.bf16.mxu0 0
          %2795 = vmatpush1.bf16.msra.mxu0 %v2641
          %2796 = vmatprep.subr.bf16.mxu0 0
          %2797 = vmatpush1.bf16.msra.mxu0 %v2642
          %2798 = vmatprep.subr.bf16.mxu0 0
          %2799 = vmatpush1.bf16.msra.mxu0 %v2643
          %2800 = vmatprep.subr.bf16.mxu0 0
          %2801 = vmatpush1.bf16.msra.mxu0 %v2644
          %2802 = vmatprep.subr.bf16.mxu0 0
          %2803 = vmatpush1.bf16.msra.mxu0 %v2645
          %2804 = vmatprep.subr.bf16.mxu0 0
          %2805 = vmatpush1.bf16.msra.mxu0 %v2646
          %2806 = vmatprep.subr.bf16.mxu0 0
          %2807 = vmatpush1.bf16.msra.mxu0 %v2647
          %2808 = vmatprep.subr.bf16.mxu0 0
          %2809 = vmatpush1.bf16.msra.mxu0 %v2648
          %2810 = vmatprep.subr.bf16.mxu0 0
          %2811 = vmatpush1.bf16.msra.mxu0 %v2649
          %2812 = vmatprep.subr.bf16.mxu0 0
          %2813 = vmatpush1.bf16.msra.mxu0 %v2650
          %2814 = vmatprep.subr.bf16.mxu0 0
          %2815 = vmatpush1.bf16.msra.mxu0 %v2651
          %2816 = vmatprep.subr.bf16.mxu0 0
          %2817 = vmatpush1.bf16.msra.mxu0 %v2652
          %2818 = vmatprep.subr.bf16.mxu0 0
          %2819 = vmatpush1.bf16.msra.mxu0 %v2653
          %2820 = vmatprep.subr.bf16.mxu0 0
          %2821 = vmatpush1.bf16.msra.mxu0 %v2654
          %2822 = vmatprep.subr.bf16.mxu0 0
          %2823 = vmatpush1.bf16.msra.mxu0 %v2655
          %2824 = vmatprep.mubr.bf16.mxu0 %v2234
          %2825 = vmatmul.mubr.bf16.gmra.mrb[0].mxu0 %v2233
          %v2826 = vpop.f32.mrb[0].mxu0
          %v2827 = vadd.f32 %v2787, %v2826
          %v2828 = vpop.f32.mrb[0].mxu0
          %v2829 = vpop.f32.mrb[0].mxu0
          %v2830 = vpop.f32.mrb[0].mxu0
          %2831 = vdwg.mxu0
          %2832 = vmatprep.subr.bf16.mxu0 0
          %2833 = vmatpush1.bf16.msra.mxu0 %v2656
          %2834 = vmatprep.subr.bf16.mxu0 0
          %2835 = vmatpush1.bf16.msra.mxu0 %v2657
          %2836 = vmatprep.subr.bf16.mxu0 0
          %2837 = vmatpush1.bf16.msra.mxu0 %v2658
          %2838 = vmatprep.subr.bf16.mxu0 0
          %2839 = vmatpush1.bf16.msra.mxu0 %v2659
          %2840 = vmatprep.subr.bf16.mxu0 0
          %2841 = vmatpush1.bf16.msra.mxu0 %v2660
          %2842 = vmatprep.subr.bf16.mxu0 0
          %2843 = vmatpush1.bf16.msra.mxu0 %v2661
          %2844 = vmatprep.subr.bf16.mxu0 0
          %2845 = vmatpush1.bf16.msra.mxu0 %v2662
          %2846 = vmatprep.subr.bf16.mxu0 0
          %2847 = vmatpush1.bf16.msra.mxu0 %v2663
          %2848 = vmatprep.subr.bf16.mxu0 0
          %2849 = vmatpush1.bf16.msra.mxu0 %v2664
          %2850 = vmatprep.subr.bf16.mxu0 0
          %2851 = vmatpush1.bf16.msra.mxu0 %v2665
          %2852 = vmatprep.subr.bf16.mxu0 0
          %2853 = vmatpush1.bf16.msra.mxu0 %v2666
          %2854 = vmatprep.subr.bf16.mxu0 0
          %2855 = vmatpush1.bf16.msra.mxu0 %v2667
          %2856 = vmatprep.subr.bf16.mxu0 0
          %2857 = vmatpush1.bf16.msra.mxu0 %v2668
          %2858 = vmatprep.subr.bf16.mxu0 0
          %2859 = vmatpush1.bf16.msra.mxu0 %v2669
          %2860 = vmatprep.subr.bf16.mxu0 0
          %2861 = vmatpush1.bf16.msra.mxu0 %v2670
          %2862 = vmatprep.subr.bf16.mxu0 0
          %2863 = vmatpush1.bf16.msra.mxu0 %v2671
          %2864 = vmatprep.mubr.bf16.mxu0 %v2236
          %2865 = vmatmul.mubr.bf16.gmra.mrb[0].mxu0 %v2235
          %v2866 = vpop.f32.mrb[0].mxu0
          %v2867 = vadd.f32 %v2827, %v2866
          %v2868 = vpop.f32.mrb[0].mxu0
          %v2869 = vpop.f32.mrb[0].mxu0
          %v2870 = vpop.f32.mrb[0].mxu0
          %2871 = vdwg.mxu0
          %2872 = vmatprep.subr.bf16.mxu0 0
          %2873 = vmatpush1.bf16.msra.mxu0 %v2672
          %2874 = vmatprep.subr.bf16.mxu0 0
          %2875 = vmatpush1.bf16.msra.mxu0 %v2673
          %2876 = vmatprep.subr.bf16.mxu0 0
          %2877 = vmatpush1.bf16.msra.mxu0 %v2674
          %2878 = vmatprep.subr.bf16.mxu0 0
          %2879 = vmatpush1.bf16.msra.mxu0 %v2675
          %2880 = vmatprep.subr.bf16.mxu0 0
          %2881 = vmatpush1.bf16.msra.mxu0 %v2676
          %2882 = vmatprep.subr.bf16.mxu0 0
          %2883 = vmatpush1.bf16.msra.mxu0 %v2677
          %2884 = vmatprep.subr.bf16.mxu0 0
          %2885 = vmatpush1.bf16.msra.mxu0 %v2678
          %2886 = vmatprep.subr.bf16.mxu0 0
          %2887 = vmatpush1.bf16.msra.mxu0 %v2679
          %2888 = vmatprep.subr.bf16.mxu0 0
          %2889 = vmatpush1.bf16.msra.mxu0 %v2680
          %2890 = vmatprep.subr.bf16.mxu0 0
          %2891 = vmatpush1.bf16.msra.mxu0 %v2681
          %2892 = vmatprep.subr.bf16.mxu0 0
          %2893 = vmatpush1.bf16.msra.mxu0 %v2682
          %2894 = vmatprep.subr.bf16.mxu0 0
          %2895 = vmatpush1.bf16.msra.mxu0 %v2683
          %2896 = vmatprep.subr.bf16.mxu0 0
          %2897 = vmatpush1.bf16.msra.mxu0 %v2684
          %2898 = vmatprep.subr.bf16.mxu0 0
          %2899 = vmatpush1.bf16.msra.mxu0 %v2685
          %2900 = vmatprep.subr.bf16.mxu0 0
          %2901 = vmatpush1.bf16.msra.mxu0 %v2686
          %2902 = vmatprep.subr.bf16.mxu0 0
          %2903 = vmatpush1.bf16.msra.mxu0 %v2687
          %2904 = vmatprep.mubr.bf16.mxu0 %v2238
          %2905 = vmatmul.mubr.bf16.gmra.mrb[0].mxu0 %v2237
          %v2906 = vpop.f32.mrb[0].mxu0
          %v2907 = vadd.f32 %v2867, %v2906
          %v2908 = vpop.f32.mrb[0].mxu0
          %v2909 = vpop.f32.mrb[0].mxu0
          %v2910 = vpop.f32.mrb[0].mxu0
          %2911 = vdwg.mxu0
          %v2912 = vxor.u32 %v2907, 2147483648
          %v2913 = vmul.f32 %v2912, 1.442695
          %v2914 = vpow.pop %v2913
          %v2915 = vadd.f32 %v2914, 1.0
          %v2916 = vrcp.pop %v2915
          %v2917 = vmul.f32 1.0, %v2916
          %2918 = vst [vmem:[%s292] sm:$0x1] %v2917
        $region63: #{efficientnet_forward.1} parent=47 // pred_fallthru
          _
        %s2919 = sand.u32 %s195, 1
        %s2920 = scalar_lea.sflag [#allocation4], %s2919
        %s2921 = sand.u32 %s195, 1
        %s2922 = scalar_lea.vmem [#allocation3], %s2921
        // Predicated region
        $region64: #{efficientnet_forward.1} parent=47 // pred_check
          %p2923 = pneg %p205
        $region65: #{efficientnet_forward.1} parent=47 // pred_check_branch
          %2925 = sbr.rel (%p2923) target = $region67
        $region66: #{efficientnet_forward.1} parent=47 // pred_region
          %s2927 = ssub.s32 16, 16
          %2928 = vsyncadd %s2920, %s2927
          %s2929 = smul.addr %s25, 16
          %s2930 = scalar_lea.hbm %s7, %s2929
          %s2932 = sshll.u32 %s2922, 4
          %s2933 = int_to_ptr.vmem [resolvable:$true] %s2932
          %2935 = dma.vmem_to_hbm [thread:$0]  %s2933, 16, %s2930, %s2920
        $region67: #{efficientnet_forward.1} parent=47 // pred_fallthru
          _
      $region48: #{efficientnet_forward.1} parent=5 // pred_fallthru
        _
      %p2936 = scmp.le.s32.totalorder 2, %s16
      // Predicated region
      $region68: #{efficientnet_forward.1} parent=5 // pred_check
        %p2937 = pneg %p2936
      $region69: #{efficientnet_forward.1} parent=5 // pred_check_branch
        %2939 = sbr.rel (%p2937) target = $region71
      $region70: #{efficientnet_forward.1} parent=5 // pred_region
        %s2940 = ssub.s32 %s16, 2
        // Predicated region
        $region72: #{efficientnet_forward.1} parent=70 // pred_check
          %p2941 = pneg %p211
        $region73: #{efficientnet_forward.1} parent=70 // pred_check_branch
          %2943 = sbr.rel (%p2941) target = $region75
        $region74: #{efficientnet_forward.1} parent=70 // pred_region
          %s2944 = sand.u32 %s196, 1
          %s2945 = scalar_lea.sflag [#allocation4], %s2944
          %s2946 = sand.u32 %s196, 1
          %s2947 = scalar_lea.vmem [#allocation3], %s2946
          %2948 = dma.done %s2945, 16
        $region75: #{efficientnet_forward.1} parent=70 // pred_fallthru
          _
      $region71: #{efficientnet_forward.1} parent=5 // pred_fallthru
        _
    $region6: #{efficientnet_forward.1} parent=1 // loop_footer
      %s20 = sadd.s32 1, %s16
    $region7: #{efficientnet_forward.1} parent=1 // loop_footer_branch
      %15 = sbr.rel target = $region3
    $region8: #{efficientnet_forward.1} parent=1 // loop_exit
      _
    %2949 = vsyncpa [#allocation4], 1
    %s2950 = scalar_lea.sflag [#allocation4], 1
    %2951 = vsyncpa %s2950, 1

</llo_original>
